<compile_context>
chip_gen: v7x
topology: tpu7x:2x2x1
jax: 0.10.0
libtpu: 0.0.40
codegen_flags: <defaults>
</compile_context>

<pallas_src>
import jax
import jax.numpy as jnp
from jax import lax
from jax.experimental import pallas as pl
from jax.experimental.pallas import tpu as pltpu


def rl_model_kernel(x_ref, hc0_ref, w_lstm_ref, b_lstm_ref,
                    w_heads_ref, b_heads_ref,
                    tag_ref, logprob_ref, baseline_ref, tstop_ref):
    TB, D = x_ref.shape                     # x is (T*B, D), rows ordered (t, b)
    B = hc0_ref.shape[0]
    H = hc0_ref.shape[1] // 2
    T = TB // B
    C = w_heads_ref.shape[1] - 3            # heads = [baseline(1) | action(2) | classes(C)]

    # ---- hoisted input projection: one matmul for all T steps (off the serial chain) -------
    w_ih = w_lstm_ref[0:D, :]                                              # (D, 4H)
    w_hh = w_lstm_ref[D:D + H, :]                                          # (H, 4H)
    xproj = (jnp.dot(x_ref[...], w_ih, preferred_element_type=jnp.float32)
             + b_lstm_ref[...])                                            # (T*B, 4H)

    h = hc0_ref[:, 0:H]
    c = hc0_ref[:, H:2 * H]
    h_sum = jnp.zeros((B, H), jnp.float32)

    avgs = []                               # per-step running mean of hiddens, each (B, H)
    # Fully unrolled recurrence: per step only h @ w_hh sits on the MXU critical path.
    for t in range(T):
        gates = xproj[t * B:(t + 1) * B, :] + jnp.dot(
            h, w_hh, preferred_element_type=jnp.float32)                   # (B, 4H)
        sig = jax.nn.sigmoid(gates)         # full-width: 1 EUP push covers i, f, o gates
        th = jnp.tanh(gates)                # full-width: 1 EUP push covers the g gate
        i_g = sig[:, 0 * H:1 * H]
        f_g = sig[:, 1 * H:2 * H]
        g_g = th[:, 2 * H:3 * H]
        o_g = sig[:, 3 * H:4 * H]
        c = f_g * c + i_g * g_g
        h = o_g * jnp.tanh(c)
        h_sum = h_sum + h
        avgs.append(h_sum * (1.0 / (t + 1)))     # compile-time reciprocal, no per-step divide

    # ---- all three heads in ONE batched matmul over every (t, b) pair ------------------------
    avg_all = jnp.concatenate(avgs, axis=0)                                # (T*B, H)
    head = (jnp.dot(avg_all, w_heads_ref[...],
                    preferred_element_type=jnp.float32)
            + b_heads_ref[...])                                            # (T*B, 1+2+C)

    base_all = head[:, 0:1]                                                # (T*B, 1)
    act_all = head[:, 1:3]                                                 # (T*B, 2)
    cls_all = head[:, 3:3 + C]                                             # (T*B, C)

    # ActionSelector input is mean over batch of hiddens_avg; by linearity that equals the
    # batch-mean of the per-row action logits.
    act_t = jnp.concatenate(
        [jnp.mean(act_all[t * B:(t + 1) * B, :], axis=0, keepdims=True)
         for t in range(T)], axis=0)                                       # (T, 2)

    diff = act_t[:, 0:1] - act_t[:, 1:2]                                   # (T, 1)
    stop_mask = diff >= 0.0                     # argmax == 0 (ties -> action 0 -> stop)
    # log prob of the argmax action of a 2-way softmax: -log(1 + exp(-|l0 - l1|))
    logp = -jnp.log(1.0 + jnp.exp(-jnp.abs(diff)))                         # (T, 1)

    t_idx = lax.broadcasted_iota(jnp.int32, (T, 1), 0)
    cand = jnp.where(stop_mask, t_idx, T)
    t_stop = jnp.minimum(jnp.min(cand, axis=0, keepdims=True), T - 1)      # (1, 1) int32

    valid_t = t_idx <= t_stop                                              # steps that ran
    logprob_ref[...] = jnp.where(valid_t, logp, 0.0)

    row_idx = lax.broadcasted_iota(jnp.int32, (TB, 1), 0)
    valid_row = row_idx < (t_stop + 1) * B
    baseline_ref[...] = jnp.where(valid_row, base_all, 0.0)

    # Classifier on hiddens_avg frozen at the decision step; softmax over the batch axis (dim=0).
    tag_logits = jnp.zeros((B, C), jnp.float32)
    for t in range(T):
        tag_logits = jnp.where(t_stop == t, cls_all[t * B:(t + 1) * B, :], tag_logits)
    mc = jnp.max(tag_logits, axis=0, keepdims=True)
    ec = jnp.exp(tag_logits - mc)
    tag_ref[...] = ec / jnp.sum(ec, axis=0, keepdims=True)

    tstop_ref[...] = t_stop


def rl_model_forward(x, h0, c0, params):
    """x: (B, T, D) float32; h0/c0: (B, H). Returns (tag_dist, action_logprobs, baselines, t_stop)."""
    B, T, D = x.shape
    C = params["w_cls"].shape[1]

    # (B,T,D) -> (T*B, D) so each step's batch rows are contiguous (one-time host-side relayout).
    x2 = jnp.transpose(x, (1, 0, 2)).reshape(T * B, D)
    hc0 = jnp.concatenate([h0, c0], axis=1)                                    # (B, 2H)
    # Pack the small parameter tensors -> fewer kernel inputs / DMA descriptors.
    w_lstm = jnp.concatenate([params["w_ih"], params["w_hh"]], axis=0)         # (D+H, 4H)
    w_heads = jnp.concatenate(
        [params["w_bas"], params["w_act"], params["w_cls"]], axis=1)           # (H, 1+2+C)
    b_heads = jnp.concatenate(
        [params["b_bas"], params["b_act"], params["b_cls"]], axis=1)           # (1, 1+2+C)

    vmem = pl.BlockSpec(memory_space=pltpu.MemorySpace.VMEM)
    args = (x2, hc0, w_lstm, params["b_lstm"], w_heads, b_heads)

    tag, logp, base, tstop = pl.pallas_call(
        rl_model_kernel,
        out_shape=(jax.ShapeDtypeStruct((B, C), jnp.float32),
                   jax.ShapeDtypeStruct((T, 1), jnp.float32),
                   jax.ShapeDtypeStruct((T * B, 1), jnp.float32),
                   jax.ShapeDtypeStruct((1, 1), jnp.int32)),
        in_specs=[vmem] * len(args),
        out_specs=(vmem, vmem, vmem, vmem),
    )(*args)

    baselines = base.reshape(T, B).T                                           # (B, T)
    return tag, logp[:, 0], baselines, tstop[0, 0]


def init_params(key, input_dim, hidden_dim, num_classes):
    ks = jax.random.split(key, 10)

    def u(k, shape, fan_in):
        bound = 1.0 / float(fan_in) ** 0.5
        return jax.random.uniform(k, shape, jnp.float32, -bound, bound)

    H = hidden_dim
    return dict(
        # LSTMCell params (stored transposed: (in, 4H)); gate order i, f, g, o
        w_ih=u(ks[0], (input_dim, 4 * H), H),
        w_hh=u(ks[1], (H, 4 * H), H),
        b_lstm=u(ks[2], (1, 4 * H), H) + u(ks[3], (1, 4 * H), H),
        # Baseline: Linear(H, 1)
        w_bas=u(ks[4], (H, 1), H),
        b_bas=u(ks[5], (1, 1), H),
        # ActionSelector: Linear(H, 2)
        w_act=u(ks[6], (H, 2), H),
        b_act=u(ks[7], (1, 2), H),
        # Classifier: Linear(H, num_classes)
        w_cls=u(ks[8], (H, num_classes), H),
        b_cls=u(ks[9], (1, num_classes), H),
    )


if __name__ == "__main__":
    B, T, D, H, C = 2, 8, 16, 32, 4   # batch, seq, input_dim, hidden_dim, num_classes

    key = jax.random.PRNGKey(0)
    k_x, k_p = jax.random.split(key)
    x = jax.random.normal(k_x, (B, T, D), jnp.float32)
    h0 = jnp.zeros((B, H), jnp.float32)    # RLModel.init_hidden
    c0 = jnp.zeros((B, H), jnp.float32)
    params = init_params(k_p, D, H, C)

    tag_dist, action_logprobs, baselines, t_stop = rl_model_forward(x, h0, c0, params)
    jax.block_until_ready((tag_dist, action_logprobs, baselines, t_stop))

    assert tag_dist.shape == (B, C)
    assert action_logprobs.shape == (T,)
    assert baselines.shape == (B, T)
    print("KERNEL_OK")
</pallas_src>

<mosaic_0001>
module attributes {stable_mosaic.version = 11 : i64} {
  func.func @rl_model_kernel(%arg0: memref<16x16xf32, #tpu.memory_space<vmem>>, %arg1: memref<2x64xf32, #tpu.memory_space<vmem>>, %arg2: memref<48x128xf32, #tpu.memory_space<vmem>>, %arg3: memref<1x128xf32, #tpu.memory_space<vmem>>, %arg4: memref<32x7xf32, #tpu.memory_space<vmem>>, %arg5: memref<1x7xf32, #tpu.memory_space<vmem>>, %arg6: memref<2x4xf32, #tpu.memory_space<vmem>>, %arg7: memref<8x1xf32, #tpu.memory_space<vmem>>, %arg8: memref<16x1xf32, #tpu.memory_space<vmem>>, %arg9: memref<1x1xi32, #tpu.memory_space<vmem>>) attributes {dimension_semantics = [], scalar_prefetch = 0 : i64, scratch_operands = 0 : i64, tpu.core_type = #tpu.core_type<tc>} {
    %c0 = arith.constant 0 : index
    %c0_0 = arith.constant 0 : index
    %0 = vector.load %arg2[%c0, %c0_0] : memref<48x128xf32, #tpu.memory_space<vmem>>, vector<16x128xf32>
    %c16 = arith.constant 16 : index
    %c0_1 = arith.constant 0 : index
    %1 = vector.load %arg2[%c16, %c0_1] : memref<48x128xf32, #tpu.memory_space<vmem>>, vector<32x128xf32>
    %c0_2 = arith.constant 0 : index
    %c0_3 = arith.constant 0 : index
    %2 = vector.load %arg0[%c0_2, %c0_3] : memref<16x16xf32, #tpu.memory_space<vmem>>, vector<16x16xf32>
    %cst = arith.constant dense<0.000000e+00> : vector<16x128xf32>
    %3 = tpu.matmul %2, %0, %cst {dimension_numbers = #tpu.dot_dimension_numbers<[1], [0], [0], [1], [0, 0, 1, 1], [], []>} : vector<16x16xf32>, vector<16x128xf32>, vector<16x128xf32> -> vector<16x128xf32>
    %c0_4 = arith.constant 0 : index
    %c0_5 = arith.constant 0 : index
    %4 = vector.load %arg3[%c0_4, %c0_5] : memref<1x128xf32, #tpu.memory_space<vmem>>, vector<1x128xf32>
    %5 = vector.broadcast %4 : vector<1x128xf32> to vector<16x128xf32>
    %6 = arith.addf %3, %5 : vector<16x128xf32>
    %c0_6 = arith.constant 0 : index
    %c0_7 = arith.constant 0 : index
    %7 = vector.load %arg1[%c0_6, %c0_7] : memref<2x64xf32, #tpu.memory_space<vmem>>, vector<2x32xf32>
    %c0_8 = arith.constant 0 : index
    %c32 = arith.constant 32 : index
    %8 = vector.load %arg1[%c0_8, %c32] : memref<2x64xf32, #tpu.memory_space<vmem>>, vector<2x32xf32>
    %cst_9 = arith.constant 0.000000e+00 : f32
    %9 = vector.broadcast %cst_9 : f32 to vector<2x32xf32>
    %10 = vector.extract_strided_slice %6 {offsets = [0, 0], sizes = [2, 128], strides = [1, 1]} : vector<16x128xf32> to vector<2x128xf32>
    %cst_10 = arith.constant dense<0.000000e+00> : vector<2x128xf32>
    %11 = tpu.matmul %7, %1, %cst_10 {dimension_numbers = #tpu.dot_dimension_numbers<[1], [0], [0], [1], [0, 0, 1, 1], [], []>} : vector<2x32xf32>, vector<32x128xf32>, vector<2x128xf32> -> vector<2x128xf32>
    %12 = arith.addf %10, %11 : vector<2x128xf32>
    %13 = arith.negf %12 : vector<2x128xf32>
    %14 = math.exp %13 : vector<2x128xf32>
    %cst_11 = arith.constant 1.000000e+00 : f32
    %15 = vector.broadcast %cst_11 : f32 to vector<2x128xf32>
    %16 = arith.addf %15, %14 : vector<2x128xf32>
    %17 = arith.divf %15, %16 : vector<2x128xf32>
    %18 = math.tanh %12 : vector<2x128xf32>
    %19 = vector.extract_strided_slice %17 {offsets = [0, 0], sizes = [2, 32], strides = [1, 1]} : vector<2x128xf32> to vector<2x32xf32>
    %20 = vector.extract_strided_slice %17 {offsets = [0, 32], sizes = [2, 32], strides = [1, 1]} : vector<2x128xf32> to vector<2x32xf32>
    %21 = vector.extract_strided_slice %18 {offsets = [0, 64], sizes = [2, 32], strides = [1, 1]} : vector<2x128xf32> to vector<2x32xf32>
    %22 = vector.extract_strided_slice %17 {offsets = [0, 96], sizes = [2, 32], strides = [1, 1]} : vector<2x128xf32> to vector<2x32xf32>
    %23 = arith.mulf %20, %8 : vector<2x32xf32>
    %24 = arith.mulf %19, %21 : vector<2x32xf32>
    %25 = arith.addf %23, %24 : vector<2x32xf32>
    %26 = math.tanh %25 : vector<2x32xf32>
    %27 = arith.mulf %22, %26 : vector<2x32xf32>
    %28 = arith.addf %9, %27 : vector<2x32xf32>
    %cst_12 = arith.constant 1.000000e+00 : f32
    %29 = vector.broadcast %cst_12 : f32 to vector<2x32xf32>
    %30 = arith.mulf %28, %29 : vector<2x32xf32>
    %31 = vector.extract_strided_slice %6 {offsets = [2, 0], sizes = [2, 128], strides = [1, 1]} : vector<16x128xf32> to vector<2x128xf32>
    %cst_13 = arith.constant dense<0.000000e+00> : vector<2x128xf32>
    %32 = tpu.matmul %27, %1, %cst_13 {dimension_numbers = #tpu.dot_dimension_numbers<[1], [0], [0], [1], [0, 0, 1, 1], [], []>} : vector<2x32xf32>, vector<32x128xf32>, vector<2x128xf32> -> vector<2x128xf32>
    %33 = arith.addf %31, %32 : vector<2x128xf32>
    %34 = arith.negf %33 : vector<2x128xf32>
    %35 = math.exp %34 : vector<2x128xf32>
    %cst_14 = arith.constant 1.000000e+00 : f32
    %36 = vector.broadcast %cst_14 : f32 to vector<2x128xf32>
    %37 = arith.addf %36, %35 : vector<2x128xf32>
    %38 = arith.divf %36, %37 : vector<2x128xf32>
    %39 = math.tanh %33 : vector<2x128xf32>
    %40 = vector.extract_strided_slice %38 {offsets = [0, 0], sizes = [2, 32], strides = [1, 1]} : vector<2x128xf32> to vector<2x32xf32>
    %41 = vector.extract_strided_slice %38 {offsets = [0, 32], sizes = [2, 32], strides = [1, 1]} : vector<2x128xf32> to vector<2x32xf32>
    %42 = vector.extract_strided_slice %39 {offsets = [0, 64], sizes = [2, 32], strides = [1, 1]} : vector<2x128xf32> to vector<2x32xf32>
    %43 = vector.extract_strided_slice %38 {offsets = [0, 96], sizes = [2, 32], strides = [1, 1]} : vector<2x128xf32> to vector<2x32xf32>
    %44 = arith.mulf %41, %25 : vector<2x32xf32>
    %45 = arith.mulf %40, %42 : vector<2x32xf32>
    %46 = arith.addf %44, %45 : vector<2x32xf32>
    %47 = math.tanh %46 : vector<2x32xf32>
    %48 = arith.mulf %43, %47 : vector<2x32xf32>
    %49 = arith.addf %28, %48 : vector<2x32xf32>
    %cst_15 = arith.constant 5.000000e-01 : f32
    %50 = vector.broadcast %cst_15 : f32 to vector<2x32xf32>
    %51 = arith.mulf %49, %50 : vector<2x32xf32>
    %52 = vector.extract_strided_slice %6 {offsets = [4, 0], sizes = [2, 128], strides = [1, 1]} : vector<16x128xf32> to vector<2x128xf32>
    %cst_16 = arith.constant dense<0.000000e+00> : vector<2x128xf32>
    %53 = tpu.matmul %48, %1, %cst_16 {dimension_numbers = #tpu.dot_dimension_numbers<[1], [0], [0], [1], [0, 0, 1, 1], [], []>} : vector<2x32xf32>, vector<32x128xf32>, vector<2x128xf32> -> vector<2x128xf32>
    %54 = arith.addf %52, %53 : vector<2x128xf32>
    %55 = arith.negf %54 : vector<2x128xf32>
    %56 = math.exp %55 : vector<2x128xf32>
    %cst_17 = arith.constant 1.000000e+00 : f32
    %57 = vector.broadcast %cst_17 : f32 to vector<2x128xf32>
    %58 = arith.addf %57, %56 : vector<2x128xf32>
    %59 = arith.divf %57, %58 : vector<2x128xf32>
    %60 = math.tanh %54 : vector<2x128xf32>
    %61 = vector.extract_strided_slice %59 {offsets = [0, 0], sizes = [2, 32], strides = [1, 1]} : vector<2x128xf32> to vector<2x32xf32>
    %62 = vector.extract_strided_slice %59 {offsets = [0, 32], sizes = [2, 32], strides = [1, 1]} : vector<2x128xf32> to vector<2x32xf32>
    %63 = vector.extract_strided_slice %60 {offsets = [0, 64], sizes = [2, 32], strides = [1, 1]} : vector<2x128xf32> to vector<2x32xf32>
    %64 = vector.extract_strided_slice %59 {offsets = [0, 96], sizes = [2, 32], strides = [1, 1]} : vector<2x128xf32> to vector<2x32xf32>
    %65 = arith.mulf %62, %46 : vector<2x32xf32>
    %66 = arith.mulf %61, %63 : vector<2x32xf32>
    %67 = arith.addf %65, %66 : vector<2x32xf32>
    %68 = math.tanh %67 : vector<2x32xf32>
    %69 = arith.mulf %64, %68 : vector<2x32xf32>
    %70 = arith.addf %49, %69 : vector<2x32xf32>
    %cst_18 = arith.constant 0.333333343 : f32
    %71 = vector.broadcast %cst_18 : f32 to vector<2x32xf32>
    %72 = arith.mulf %70, %71 : vector<2x32xf32>
    %73 = vector.extract_strided_slice %6 {offsets = [6, 0], sizes = [2, 128], strides = [1, 1]} : vector<16x128xf32> to vector<2x128xf32>
    %cst_19 = arith.constant dense<0.000000e+00> : vector<2x128xf32>
    %74 = tpu.matmul %69, %1, %cst_19 {dimension_numbers = #tpu.dot_dimension_numbers<[1], [0], [0], [1], [0, 0, 1, 1], [], []>} : vector<2x32xf32>, vector<32x128xf32>, vector<2x128xf32> -> vector<2x128xf32>
    %75 = arith.addf %73, %74 : vector<2x128xf32>
    %76 = arith.negf %75 : vector<2x128xf32>
    %77 = math.exp %76 : vector<2x128xf32>
    %cst_20 = arith.constant 1.000000e+00 : f32
    %78 = vector.broadcast %cst_20 : f32 to vector<2x128xf32>
    %79 = arith.addf %78, %77 : vector<2x128xf32>
    %80 = arith.divf %78, %79 : vector<2x128xf32>
    %81 = math.tanh %75 : vector<2x128xf32>
    %82 = vector.extract_strided_slice %80 {offsets = [0, 0], sizes = [2, 32], strides = [1, 1]} : vector<2x128xf32> to vector<2x32xf32>
    %83 = vector.extract_strided_slice %80 {offsets = [0, 32], sizes = [2, 32], strides = [1, 1]} : vector<2x128xf32> to vector<2x32xf32>
    %84 = vector.extract_strided_slice %81 {offsets = [0, 64], sizes = [2, 32], strides = [1, 1]} : vector<2x128xf32> to vector<2x32xf32>
    %85 = vector.extract_strided_slice %80 {offsets = [0, 96], sizes = [2, 32], strides = [1, 1]} : vector<2x128xf32> to vector<2x32xf32>
    %86 = arith.mulf %83, %67 : vector<2x32xf32>
    %87 = arith.mulf %82, %84 : vector<2x32xf32>
    %88 = arith.addf %86, %87 : vector<2x32xf32>
    %89 = math.tanh %88 : vector<2x32xf32>
    %90 = arith.mulf %85, %89 : vector<2x32xf32>
    %91 = arith.addf %70, %90 : vector<2x32xf32>
    %cst_21 = arith.constant 2.500000e-01 : f32
    %92 = vector.broadcast %cst_21 : f32 to vector<2x32xf32>
    %93 = arith.mulf %91, %92 : vector<2x32xf32>
    %94 = vector.extract_strided_slice %6 {offsets = [8, 0], sizes = [2, 128], strides = [1, 1]} : vector<16x128xf32> to vector<2x128xf32>
    %cst_22 = arith.constant dense<0.000000e+00> : vector<2x128xf32>
    %95 = tpu.matmul %90, %1, %cst_22 {dimension_numbers = #tpu.dot_dimension_numbers<[1], [0], [0], [1], [0, 0, 1, 1], [], []>} : vector<2x32xf32>, vector<32x128xf32>, vector<2x128xf32> -> vector<2x128xf32>
    %96 = arith.addf %94, %95 : vector<2x128xf32>
    %97 = arith.negf %96 : vector<2x128xf32>
    %98 = math.exp %97 : vector<2x128xf32>
    %cst_23 = arith.constant 1.000000e+00 : f32
    %99 = vector.broadcast %cst_23 : f32 to vector<2x128xf32>
    %100 = arith.addf %99, %98 : vector<2x128xf32>
    %101 = arith.divf %99, %100 : vector<2x128xf32>
    %102 = math.tanh %96 : vector<2x128xf32>
    %103 = vector.extract_strided_slice %101 {offsets = [0, 0], sizes = [2, 32], strides = [1, 1]} : vector<2x128xf32> to vector<2x32xf32>
    %104 = vector.extract_strided_slice %101 {offsets = [0, 32], sizes = [2, 32], strides = [1, 1]} : vector<2x128xf32> to vector<2x32xf32>
    %105 = vector.extract_strided_slice %102 {offsets = [0, 64], sizes = [2, 32], strides = [1, 1]} : vector<2x128xf32> to vector<2x32xf32>
    %106 = vector.extract_strided_slice %101 {offsets = [0, 96], sizes = [2, 32], strides = [1, 1]} : vector<2x128xf32> to vector<2x32xf32>
    %107 = arith.mulf %104, %88 : vector<2x32xf32>
    %108 = arith.mulf %103, %105 : vector<2x32xf32>
    %109 = arith.addf %107, %108 : vector<2x32xf32>
    %110 = math.tanh %109 : vector<2x32xf32>
    %111 = arith.mulf %106, %110 : vector<2x32xf32>
    %112 = arith.addf %91, %111 : vector<2x32xf32>
    %cst_24 = arith.constant 2.000000e-01 : f32
    %113 = vector.broadcast %cst_24 : f32 to vector<2x32xf32>
    %114 = arith.mulf %112, %113 : vector<2x32xf32>
    %115 = vector.extract_strided_slice %6 {offsets = [10, 0], sizes = [2, 128], strides = [1, 1]} : vector<16x128xf32> to vector<2x128xf32>
    %cst_25 = arith.constant dense<0.000000e+00> : vector<2x128xf32>
    %116 = tpu.matmul %111, %1, %cst_25 {dimension_numbers = #tpu.dot_dimension_numbers<[1], [0], [0], [1], [0, 0, 1, 1], [], []>} : vector<2x32xf32>, vector<32x128xf32>, vector<2x128xf32> -> vector<2x128xf32>
    %117 = arith.addf %115, %116 : vector<2x128xf32>
    %118 = arith.negf %117 : vector<2x128xf32>
    %119 = math.exp %118 : vector<2x128xf32>
    %cst_26 = arith.constant 1.000000e+00 : f32
    %120 = vector.broadcast %cst_26 : f32 to vector<2x128xf32>
    %121 = arith.addf %120, %119 : vector<2x128xf32>
    %122 = arith.divf %120, %121 : vector<2x128xf32>
    %123 = math.tanh %117 : vector<2x128xf32>
    %124 = vector.extract_strided_slice %122 {offsets = [0, 0], sizes = [2, 32], strides = [1, 1]} : vector<2x128xf32> to vector<2x32xf32>
    %125 = vector.extract_strided_slice %122 {offsets = [0, 32], sizes = [2, 32], strides = [1, 1]} : vector<2x128xf32> to vector<2x32xf32>
    %126 = vector.extract_strided_slice %123 {offsets = [0, 64], sizes = [2, 32], strides = [1, 1]} : vector<2x128xf32> to vector<2x32xf32>
    %127 = vector.extract_strided_slice %122 {offsets = [0, 96], sizes = [2, 32], strides = [1, 1]} : vector<2x128xf32> to vector<2x32xf32>
    %128 = arith.mulf %125, %109 : vector<2x32xf32>
    %129 = arith.mulf %124, %126 : vector<2x32xf32>
    %130 = arith.addf %128, %129 : vector<2x32xf32>
    %131 = math.tanh %130 : vector<2x32xf32>
    %132 = arith.mulf %127, %131 : vector<2x32xf32>
    %133 = arith.addf %112, %132 : vector<2x32xf32>
    %cst_27 = arith.constant 0.166666672 : f32
    %134 = vector.broadcast %cst_27 : f32 to vector<2x32xf32>
    %135 = arith.mulf %133, %134 : vector<2x32xf32>
    %136 = vector.extract_strided_slice %6 {offsets = [12, 0], sizes = [2, 128], strides = [1, 1]} : vector<16x128xf32> to vector<2x128xf32>
    %cst_28 = arith.constant dense<0.000000e+00> : vector<2x128xf32>
    %137 = tpu.matmul %132, %1, %cst_28 {dimension_numbers = #tpu.dot_dimension_numbers<[1], [0], [0], [1], [0, 0, 1, 1], [], []>} : vector<2x32xf32>, vector<32x128xf32>, vector<2x128xf32> -> vector<2x128xf32>
    %138 = arith.addf %136, %137 : vector<2x128xf32>
    %139 = arith.negf %138 : vector<2x128xf32>
    %140 = math.exp %139 : vector<2x128xf32>
    %cst_29 = arith.constant 1.000000e+00 : f32
    %141 = vector.broadcast %cst_29 : f32 to vector<2x128xf32>
    %142 = arith.addf %141, %140 : vector<2x128xf32>
    %143 = arith.divf %141, %142 : vector<2x128xf32>
    %144 = math.tanh %138 : vector<2x128xf32>
    %145 = vector.extract_strided_slice %143 {offsets = [0, 0], sizes = [2, 32], strides = [1, 1]} : vector<2x128xf32> to vector<2x32xf32>
    %146 = vector.extract_strided_slice %143 {offsets = [0, 32], sizes = [2, 32], strides = [1, 1]} : vector<2x128xf32> to vector<2x32xf32>
    %147 = vector.extract_strided_slice %144 {offsets = [0, 64], sizes = [2, 32], strides = [1, 1]} : vector<2x128xf32> to vector<2x32xf32>
    %148 = vector.extract_strided_slice %143 {offsets = [0, 96], sizes = [2, 32], strides = [1, 1]} : vector<2x128xf32> to vector<2x32xf32>
    %149 = arith.mulf %146, %130 : vector<2x32xf32>
    %150 = arith.mulf %145, %147 : vector<2x32xf32>
    %151 = arith.addf %149, %150 : vector<2x32xf32>
    %152 = math.tanh %151 : vector<2x32xf32>
    %153 = arith.mulf %148, %152 : vector<2x32xf32>
    %154 = arith.addf %133, %153 : vector<2x32xf32>
    %cst_30 = arith.constant 0.142857149 : f32
    %155 = vector.broadcast %cst_30 : f32 to vector<2x32xf32>
    %156 = arith.mulf %154, %155 : vector<2x32xf32>
    %157 = vector.extract_strided_slice %6 {offsets = [14, 0], sizes = [2, 128], strides = [1, 1]} : vector<16x128xf32> to vector<2x128xf32>
    %cst_31 = arith.constant dense<0.000000e+00> : vector<2x128xf32>
    %158 = tpu.matmul %153, %1, %cst_31 {dimension_numbers = #tpu.dot_dimension_numbers<[1], [0], [0], [1], [0, 0, 1, 1], [], []>} : vector<2x32xf32>, vector<32x128xf32>, vector<2x128xf32> -> vector<2x128xf32>
    %159 = arith.addf %157, %158 : vector<2x128xf32>
    %160 = arith.negf %159 : vector<2x128xf32>
    %161 = math.exp %160 : vector<2x128xf32>
    %cst_32 = arith.constant 1.000000e+00 : f32
    %162 = vector.broadcast %cst_32 : f32 to vector<2x128xf32>
    %163 = arith.addf %162, %161 : vector<2x128xf32>
    %164 = arith.divf %162, %163 : vector<2x128xf32>
    %165 = math.tanh %159 : vector<2x128xf32>
    %166 = vector.extract_strided_slice %164 {offsets = [0, 0], sizes = [2, 32], strides = [1, 1]} : vector<2x128xf32> to vector<2x32xf32>
    %167 = vector.extract_strided_slice %164 {offsets = [0, 32], sizes = [2, 32], strides = [1, 1]} : vector<2x128xf32> to vector<2x32xf32>
    %168 = vector.extract_strided_slice %165 {offsets = [0, 64], sizes = [2, 32], strides = [1, 1]} : vector<2x128xf32> to vector<2x32xf32>
    %169 = vector.extract_strided_slice %164 {offsets = [0, 96], sizes = [2, 32], strides = [1, 1]} : vector<2x128xf32> to vector<2x32xf32>
    %170 = arith.mulf %167, %151 : vector<2x32xf32>
    %171 = arith.mulf %166, %168 : vector<2x32xf32>
    %172 = arith.addf %170, %171 : vector<2x32xf32>
    %173 = math.tanh %172 : vector<2x32xf32>
    %174 = arith.mulf %169, %173 : vector<2x32xf32>
    %175 = arith.addf %154, %174 : vector<2x32xf32>
    %cst_33 = arith.constant 1.250000e-01 : f32
    %176 = vector.broadcast %cst_33 : f32 to vector<2x32xf32>
    %177 = arith.mulf %175, %176 : vector<2x32xf32>
    %178 = tpu.concatenate %30, %51, %72, %93, %114, %135, %156, %177 in 0 : vector<2x32xf32>, vector<2x32xf32>, vector<2x32xf32>, vector<2x32xf32>, vector<2x32xf32>, vector<2x32xf32>, vector<2x32xf32>, vector<2x32xf32> -> vector<16x32xf32>
    %c0_34 = arith.constant 0 : index
    %c0_35 = arith.constant 0 : index
    %179 = vector.load %arg4[%c0_34, %c0_35] : memref<32x7xf32, #tpu.memory_space<vmem>>, vector<32x7xf32>
    %cst_36 = arith.constant dense<0.000000e+00> : vector<16x7xf32>
    %180 = tpu.matmul %178, %179, %cst_36 {dimension_numbers = #tpu.dot_dimension_numbers<[1], [0], [0], [1], [0, 0, 1, 1], [], []>} : vector<16x32xf32>, vector<32x7xf32>, vector<16x7xf32> -> vector<16x7xf32>
    %c0_37 = arith.constant 0 : index
    %c0_38 = arith.constant 0 : index
    %181 = vector.load %arg5[%c0_37, %c0_38] : memref<1x7xf32, #tpu.memory_space<vmem>>, vector<1x7xf32>
    %182 = vector.broadcast %181 : vector<1x7xf32> to vector<16x7xf32>
    %183 = arith.addf %180, %182 : vector<16x7xf32>
    %184 = vector.extract_strided_slice %183 {offsets = [0, 0], sizes = [16, 1], strides = [1, 1]} : vector<16x7xf32> to vector<16x1xf32>
    %185 = vector.extract_strided_slice %183 {offsets = [0, 1], sizes = [16, 2], strides = [1, 1]} : vector<16x7xf32> to vector<16x2xf32>
    %186 = vector.extract_strided_slice %183 {offsets = [0, 3], sizes = [16, 4], strides = [1, 1]} : vector<16x7xf32> to vector<16x4xf32>
    %187 = vector.extract_strided_slice %185 {offsets = [0, 0], sizes = [2, 2], strides = [1, 1]} : vector<16x2xf32> to vector<2x2xf32>
    %cst_39 = arith.constant dense<0.000000e+00> : vector<2xf32>
    %188 = vector.multi_reduction <add>, %187, %cst_39 [0] : vector<2x2xf32> to vector<2xf32>
    %189 = vector.shape_cast %188 : vector<2xf32> to vector<1x2xf32>
    %cst_40 = arith.constant 2.000000e+00 : f32
    %190 = vector.broadcast %cst_40 : f32 to vector<1x2xf32>
    %191 = arith.divf %189, %190 : vector<1x2xf32>
    %192 = vector.extract_strided_slice %185 {offsets = [2, 0], sizes = [2, 2], strides = [1, 1]} : vector<16x2xf32> to vector<2x2xf32>
    %cst_41 = arith.constant dense<0.000000e+00> : vector<2xf32>
    %193 = vector.multi_reduction <add>, %192, %cst_41 [0] : vector<2x2xf32> to vector<2xf32>
    %194 = vector.shape_cast %193 : vector<2xf32> to vector<1x2xf32>
    %cst_42 = arith.constant 2.000000e+00 : f32
    %195 = vector.broadcast %cst_42 : f32 to vector<1x2xf32>
    %196 = arith.divf %194, %195 : vector<1x2xf32>
    %197 = vector.extract_strided_slice %185 {offsets = [4, 0], sizes = [2, 2], strides = [1, 1]} : vector<16x2xf32> to vector<2x2xf32>
    %cst_43 = arith.constant dense<0.000000e+00> : vector<2xf32>
    %198 = vector.multi_reduction <add>, %197, %cst_43 [0] : vector<2x2xf32> to vector<2xf32>
    %199 = vector.shape_cast %198 : vector<2xf32> to vector<1x2xf32>
    %cst_44 = arith.constant 2.000000e+00 : f32
    %200 = vector.broadcast %cst_44 : f32 to vector<1x2xf32>
    %201 = arith.divf %199, %200 : vector<1x2xf32>
    %202 = vector.extract_strided_slice %185 {offsets = [6, 0], sizes = [2, 2], strides = [1, 1]} : vector<16x2xf32> to vector<2x2xf32>
    %cst_45 = arith.constant dense<0.000000e+00> : vector<2xf32>
    %203 = vector.multi_reduction <add>, %202, %cst_45 [0] : vector<2x2xf32> to vector<2xf32>
    %204 = vector.shape_cast %203 : vector<2xf32> to vector<1x2xf32>
    %cst_46 = arith.constant 2.000000e+00 : f32
    %205 = vector.broadcast %cst_46 : f32 to vector<1x2xf32>
    %206 = arith.divf %204, %205 : vector<1x2xf32>
    %207 = vector.extract_strided_slice %185 {offsets = [8, 0], sizes = [2, 2], strides = [1, 1]} : vector<16x2xf32> to vector<2x2xf32>
    %cst_47 = arith.constant dense<0.000000e+00> : vector<2xf32>
    %208 = vector.multi_reduction <add>, %207, %cst_47 [0] : vector<2x2xf32> to vector<2xf32>
    %209 = vector.shape_cast %208 : vector<2xf32> to vector<1x2xf32>
    %cst_48 = arith.constant 2.000000e+00 : f32
    %210 = vector.broadcast %cst_48 : f32 to vector<1x2xf32>
    %211 = arith.divf %209, %210 : vector<1x2xf32>
    %212 = vector.extract_strided_slice %185 {offsets = [10, 0], sizes = [2, 2], strides = [1, 1]} : vector<16x2xf32> to vector<2x2xf32>
    %cst_49 = arith.constant dense<0.000000e+00> : vector<2xf32>
    %213 = vector.multi_reduction <add>, %212, %cst_49 [0] : vector<2x2xf32> to vector<2xf32>
    %214 = vector.shape_cast %213 : vector<2xf32> to vector<1x2xf32>
    %cst_50 = arith.constant 2.000000e+00 : f32
    %215 = vector.broadcast %cst_50 : f32 to vector<1x2xf32>
    %216 = arith.divf %214, %215 : vector<1x2xf32>
    %217 = vector.extract_strided_slice %185 {offsets = [12, 0], sizes = [2, 2], strides = [1, 1]} : vector<16x2xf32> to vector<2x2xf32>
    %cst_51 = arith.constant dense<0.000000e+00> : vector<2xf32>
    %218 = vector.multi_reduction <add>, %217, %cst_51 [0] : vector<2x2xf32> to vector<2xf32>
    %219 = vector.shape_cast %218 : vector<2xf32> to vector<1x2xf32>
    %cst_52 = arith.constant 2.000000e+00 : f32
    %220 = vector.broadcast %cst_52 : f32 to vector<1x2xf32>
    %221 = arith.divf %219, %220 : vector<1x2xf32>
    %222 = vector.extract_strided_slice %185 {offsets = [14, 0], sizes = [2, 2], strides = [1, 1]} : vector<16x2xf32> to vector<2x2xf32>
    %cst_53 = arith.constant dense<0.000000e+00> : vector<2xf32>
    %223 = vector.multi_reduction <add>, %222, %cst_53 [0] : vector<2x2xf32> to vector<2xf32>
    %224 = vector.shape_cast %223 : vector<2xf32> to vector<1x2xf32>
    %cst_54 = arith.constant 2.000000e+00 : f32
    %225 = vector.broadcast %cst_54 : f32 to vector<1x2xf32>
    %226 = arith.divf %224, %225 : vector<1x2xf32>
    %227 = tpu.concatenate %191, %196, %201, %206, %211, %216, %221, %226 in 0 : vector<1x2xf32>, vector<1x2xf32>, vector<1x2xf32>, vector<1x2xf32>, vector<1x2xf32>, vector<1x2xf32>, vector<1x2xf32>, vector<1x2xf32> -> vector<8x2xf32>
    %228 = vector.extract_strided_slice %227 {offsets = [0, 0], sizes = [8, 1], strides = [1, 1]} : vector<8x2xf32> to vector<8x1xf32>
    %229 = vector.extract_strided_slice %227 {offsets = [0, 1], sizes = [8, 1], strides = [1, 1]} : vector<8x2xf32> to vector<8x1xf32>
    %230 = arith.subf %228, %229 : vector<8x1xf32>
    %cst_55 = arith.constant 0.000000e+00 : f32
    %231 = vector.broadcast %cst_55 : f32 to vector<8x1xf32>
    %232 = arith.cmpf oge, %230, %231 : vector<8x1xf32>
    %233 = math.absf %230 : vector<8x1xf32>
    %cst_56 = arith.constant 0.000000e+00 : f32
    %234 = vector.broadcast %cst_56 : f32 to vector<8x1xf32>
    %235 = arith.subf %234, %233 : vector<8x1xf32>
    %236 = math.exp %235 : vector<8x1xf32>
    %cst_57 = arith.constant 1.000000e+00 : f32
    %237 = vector.broadcast %cst_57 : f32 to vector<8x1xf32>
    %238 = arith.addf %237, %236 : vector<8x1xf32>
    %239 = math.log %238 : vector<8x1xf32>
    %cst_58 = arith.constant 0.000000e+00 : f32
    %240 = vector.broadcast %cst_58 : f32 to vector<8x1xf32>
    %241 = arith.subf %240, %239 : vector<8x1xf32>
    %242 = tpu.iota {dimensions = array<i32: 0>} : vector<8x1xi32>
    %c8_i32 = arith.constant 8 : i32
    %243 = vector.broadcast %c8_i32 : i32 to vector<8x1xi32>
    %244 = arith.select %232, %242, %243 : vector<8x1xi1>, vector<8x1xi32>
    %cst_59 = arith.constant dense<2147483647> : vector<1xi32>
    %245 = vector.multi_reduction <minsi>, %244, %cst_59 [0] : vector<8x1xi32> to vector<1xi32>
    %246 = vector.shape_cast %245 : vector<1xi32> to vector<1x1xi32>
    %c7_i32 = arith.constant 7 : i32
    %247 = vector.broadcast %c7_i32 : i32 to vector<1x1xi32>
    %248 = arith.minsi %246, %247 : vector<1x1xi32>
    %249 = vector.broadcast %248 : vector<1x1xi32> to vector<8x1xi32>
    %250 = arith.cmpi sle, %242, %249 : vector<8x1xi32>
    %cst_60 = arith.constant 0.000000e+00 : f32
    %251 = vector.broadcast %cst_60 : f32 to vector<8x1xf32>
    %252 = arith.select %250, %241, %251 : vector<8x1xi1>, vector<8x1xf32>
    %c0_61 = arith.constant 0 : index
    %c0_62 = arith.constant 0 : index
    %253 = vector.load %arg7[%c0_61, %c0_62] : memref<8x1xf32, #tpu.memory_space<vmem>>, vector<8x1xf32>
    tpu.vector_store %arg7[%c0_61, %c0_62], %252 {strides = array<i32>} : memref<8x1xf32, #tpu.memory_space<vmem>>, vector<8x1xf32>,
    %254 = tpu.iota {dimensions = array<i32: 0>} : vector<16x1xi32>
    %c1_i32 = arith.constant 1 : i32
    %255 = vector.broadcast %c1_i32 : i32 to vector<1x1xi32>
    %256 = arith.addi %248, %255 : vector<1x1xi32>
    %c2_i32 = arith.constant 2 : i32
    %257 = vector.broadcast %c2_i32 : i32 to vector<1x1xi32>
    %258 = arith.muli %256, %257 : vector<1x1xi32>
    %259 = vector.broadcast %258 : vector<1x1xi32> to vector<16x1xi32>
    %260 = arith.cmpi slt, %254, %259 : vector<16x1xi32>
    %cst_63 = arith.constant 0.000000e+00 : f32
    %261 = vector.broadcast %cst_63 : f32 to vector<16x1xf32>
    %262 = arith.select %260, %184, %261 : vector<16x1xi1>, vector<16x1xf32>
    %c0_64 = arith.constant 0 : index
    %c0_65 = arith.constant 0 : index
    %263 = vector.load %arg8[%c0_64, %c0_65] : memref<16x1xf32, #tpu.memory_space<vmem>>, vector<16x1xf32>
    tpu.vector_store %arg8[%c0_64, %c0_65], %262 {strides = array<i32>} : memref<16x1xf32, #tpu.memory_space<vmem>>, vector<16x1xf32>,
    %cst_66 = arith.constant 0.000000e+00 : f32
    %264 = vector.broadcast %cst_66 : f32 to vector<2x4xf32>
    %c0_i32 = arith.constant 0 : i32
    %265 = vector.broadcast %c0_i32 : i32 to vector<1x1xi32>
    %266 = arith.cmpi eq, %248, %265 : vector<1x1xi32>
    %267 = vector.extract_strided_slice %186 {offsets = [0, 0], sizes = [2, 4], strides = [1, 1]} : vector<16x4xf32> to vector<2x4xf32>
    %268 = vector.shape_cast %266 : vector<1x1xi1> to vector<1x1xi1>
    %269 = vector.broadcast %268 : vector<1x1xi1> to vector<2x4xi1>
    %270 = arith.select %269, %267, %264 : vector<2x4xi1>, vector<2x4xf32>
    %c1_i32_67 = arith.constant 1 : i32
    %271 = vector.broadcast %c1_i32_67 : i32 to vector<1x1xi32>
    %272 = arith.cmpi eq, %248, %271 : vector<1x1xi32>
    %273 = vector.extract_strided_slice %186 {offsets = [2, 0], sizes = [2, 4], strides = [1, 1]} : vector<16x4xf32> to vector<2x4xf32>
    %274 = vector.shape_cast %272 : vector<1x1xi1> to vector<1x1xi1>
    %275 = vector.broadcast %274 : vector<1x1xi1> to vector<2x4xi1>
    %276 = arith.select %275, %273, %270 : vector<2x4xi1>, vector<2x4xf32>
    %c2_i32_68 = arith.constant 2 : i32
    %277 = vector.broadcast %c2_i32_68 : i32 to vector<1x1xi32>
    %278 = arith.cmpi eq, %248, %277 : vector<1x1xi32>
    %279 = vector.extract_strided_slice %186 {offsets = [4, 0], sizes = [2, 4], strides = [1, 1]} : vector<16x4xf32> to vector<2x4xf32>
    %280 = vector.shape_cast %278 : vector<1x1xi1> to vector<1x1xi1>
    %281 = vector.broadcast %280 : vector<1x1xi1> to vector<2x4xi1>
    %282 = arith.select %281, %279, %276 : vector<2x4xi1>, vector<2x4xf32>
    %c3_i32 = arith.constant 3 : i32
    %283 = vector.broadcast %c3_i32 : i32 to vector<1x1xi32>
    %284 = arith.cmpi eq, %248, %283 : vector<1x1xi32>
    %285 = vector.extract_strided_slice %186 {offsets = [6, 0], sizes = [2, 4], strides = [1, 1]} : vector<16x4xf32> to vector<2x4xf32>
    %286 = vector.shape_cast %284 : vector<1x1xi1> to vector<1x1xi1>
    %287 = vector.broadcast %286 : vector<1x1xi1> to vector<2x4xi1>
    %288 = arith.select %287, %285, %282 : vector<2x4xi1>, vector<2x4xf32>
    %c4_i32 = arith.constant 4 : i32
    %289 = vector.broadcast %c4_i32 : i32 to vector<1x1xi32>
    %290 = arith.cmpi eq, %248, %289 : vector<1x1xi32>
    %291 = vector.extract_strided_slice %186 {offsets = [8, 0], sizes = [2, 4], strides = [1, 1]} : vector<16x4xf32> to vector<2x4xf32>
    %292 = vector.shape_cast %290 : vector<1x1xi1> to vector<1x1xi1>
    %293 = vector.broadcast %292 : vector<1x1xi1> to vector<2x4xi1>
    %294 = arith.select %293, %291, %288 : vector<2x4xi1>, vector<2x4xf32>
    %c5_i32 = arith.constant 5 : i32
    %295 = vector.broadcast %c5_i32 : i32 to vector<1x1xi32>
    %296 = arith.cmpi eq, %248, %295 : vector<1x1xi32>
    %297 = vector.extract_strided_slice %186 {offsets = [10, 0], sizes = [2, 4], strides = [1, 1]} : vector<16x4xf32> to vector<2x4xf32>
    %298 = vector.shape_cast %296 : vector<1x1xi1> to vector<1x1xi1>
    %299 = vector.broadcast %298 : vector<1x1xi1> to vector<2x4xi1>
    %300 = arith.select %299, %297, %294 : vector<2x4xi1>, vector<2x4xf32>
    %c6_i32 = arith.constant 6 : i32
    %301 = vector.broadcast %c6_i32 : i32 to vector<1x1xi32>
    %302 = arith.cmpi eq, %248, %301 : vector<1x1xi32>
    %303 = vector.extract_strided_slice %186 {offsets = [12, 0], sizes = [2, 4], strides = [1, 1]} : vector<16x4xf32> to vector<2x4xf32>
    %304 = vector.shape_cast %302 : vector<1x1xi1> to vector<1x1xi1>
    %305 = vector.broadcast %304 : vector<1x1xi1> to vector<2x4xi1>
    %306 = arith.select %305, %303, %300 : vector<2x4xi1>, vector<2x4xf32>
    %c7_i32_69 = arith.constant 7 : i32
    %307 = vector.broadcast %c7_i32_69 : i32 to vector<1x1xi32>
    %308 = arith.cmpi eq, %248, %307 : vector<1x1xi32>
    %309 = vector.extract_strided_slice %186 {offsets = [14, 0], sizes = [2, 4], strides = [1, 1]} : vector<16x4xf32> to vector<2x4xf32>
    %310 = vector.shape_cast %308 : vector<1x1xi1> to vector<1x1xi1>
    %311 = vector.broadcast %310 : vector<1x1xi1> to vector<2x4xi1>
    %312 = arith.select %311, %309, %306 : vector<2x4xi1>, vector<2x4xf32>
    %cst_70 = arith.constant dense<0xFF800000> : vector<4xf32>
    %313 = vector.multi_reduction <maximumf>, %312, %cst_70 [0] : vector<2x4xf32> to vector<4xf32>
    %314 = vector.shape_cast %313 : vector<4xf32> to vector<1x4xf32>
    %315 = vector.broadcast %314 : vector<1x4xf32> to vector<2x4xf32>
    %316 = arith.subf %312, %315 : vector<2x4xf32>
    %317 = math.exp %316 : vector<2x4xf32>
    %cst_71 = arith.constant dense<0.000000e+00> : vector<4xf32>
    %318 = vector.multi_reduction <add>, %317, %cst_71 [0] : vector<2x4xf32> to vector<4xf32>
    %319 = vector.shape_cast %318 : vector<4xf32> to vector<1x4xf32>
    %320 = vector.broadcast %319 : vector<1x4xf32> to vector<2x4xf32>
    %321 = arith.divf %317, %320 : vector<2x4xf32>
    %c0_72 = arith.constant 0 : index
    %c0_73 = arith.constant 0 : index
    %322 = vector.load %arg6[%c0_72, %c0_73] : memref<2x4xf32, #tpu.memory_space<vmem>>, vector<2x4xf32>
    tpu.vector_store %arg6[%c0_72, %c0_73], %321 {strides = array<i32>} : memref<2x4xf32, #tpu.memory_space<vmem>>, vector<2x4xf32>,
    %c0_74 = arith.constant 0 : index
    %c0_75 = arith.constant 0 : index
    %323 = vector.load %arg9[%c0_74, %c0_75] : memref<1x1xi32, #tpu.memory_space<vmem>>, vector<1x1xi32>
    tpu.vector_store %arg9[%c0_74, %c0_75], %248 {strides = array<i32>} : memref<1x1xi32, #tpu.memory_space<vmem>>, vector<1x1xi32>,
    return
  }
}

</mosaic_0001>

<llo_original>
// kernel: tpu_custom_call.1
$region0: #{tpu_custom_call.1}
  #allocation0 [shape = 'u32[]', space=smem, size = 0x4, offset = 0x4, fixed_abs, tag = 'smem constant byte address 0x4 - core index']
  #allocation1 [shape = 'u32[144,128]{1,0:T(1,128)}', space=vmem, size = 0x12000, scoped, tag = 'internal scratch']
  %s0 = inlined_call_operand.vmem [shape: f32[16,16], index: 0, kind: input, shape index: {}]
  %s1 = inlined_call_operand.vmem [shape: f32[2,64], index: 1, kind: input, shape index: {}]
  %s2 = inlined_call_operand.hbm [shape: f32[48,128], index: 2, kind: input, shape index: {}]
  %s3 = inlined_call_operand.vmem [shape: f32[1,128], index: 3, kind: input, shape index: {}]
  %s4 = inlined_call_operand.vmem [shape: f32[32,7], index: 4, kind: input, shape index: {}]
  %s5 = inlined_call_operand.vmem [shape: f32[1,7], index: 5, kind: input, shape index: {}]
  %s6 = inlined_call_operand.hbm [shape: f32[2,4], index: 6, kind: output, shape index: {0}]
  %s7 = inlined_call_operand.vmem [shape: f32[8,1], index: 7, kind: output, shape index: {1}]
  %s8 = inlined_call_operand.vmem [shape: f32[16,1], index: 8, kind: output, shape index: {2}]
  %s9 = inlined_call_operand.hbm [shape: s32[1,1], index: 9, kind: output, shape index: {3}]
  %10 = xla_tuple %s6, %s7, %s8, %s9
  %s11 = sld [smem:[#allocation0]]
  $region62: #{tpu_custom_call.1} parent=0
    _
  %s13 = ssub.s32 1, %s11
  %s14 = scalar_select 0, %s13, %s11
  $region1: #{tpu_custom_call.1} parent=0
    #allocation2 [shape = 'u8[24576]{0}', space=vmem, size = 0x6000, scoped, tag = 'input window, operand 2, single buffered']
    #allocation3 [shape = 's32[1]{0}', space=sflag, size = 0x4, scoped, tag = 'scoped memory for tpu_custom_call.1']
    #allocation4 [shape = 's32[1]{0}', space=sflag, size = 0x4, scoped, tag = 'scoped memory for tpu_custom_call.1']
    #allocation5 [shape = 'u8[1024]{0}', space=vmem, size = 0x400, scoped, tag = 'output window, operand 0, single buffered']
    #allocation6 [shape = 'u8[512]{0}', space=vmem, size = 0x400, scoped, tag = 'output window, operand 3, single buffered']
    #allocation7 [shape = 's32[1]{0}', space=sflag, size = 0x4, scoped, tag = 'scoped memory for tpu_custom_call.1']
    %15 = vsyncpa [#allocation3], 0
    %16 = vsyncpa [#allocation4], 0
    %17 = vsyncpa [#allocation7], 0
    // Predicated region
    $region2: #{tpu_custom_call.1} parent=1 // pred_check
      _
    $region3: #{tpu_custom_call.1} parent=1 // pred_check_branch
      %19 = sbr.rel (0) target = $region5
    $region4: #{tpu_custom_call.1} parent=1 // pred_region
      _
    $region5: #{tpu_custom_call.1} parent=1 // pred_fallthru
      _
    // Predicated region
    $region6: #{tpu_custom_call.1} parent=1 // pred_check
      _
    $region7: #{tpu_custom_call.1} parent=1 // pred_check_branch
      %21 = sbr.rel (0) target = $region9
    $region8: #{tpu_custom_call.1} parent=1 // pred_region
      _
    $region9: #{tpu_custom_call.1} parent=1 // pred_fallthru
      _
    // Predicated region
    $region10: #{tpu_custom_call.1} parent=1 // pred_check
      _
    $region11: #{tpu_custom_call.1} parent=1 // pred_check_branch
      %23 = sbr.rel (0) target = $region13
    $region12: #{tpu_custom_call.1} parent=1 // pred_region
      %s25 = ssub.s32 768, 768
      %26 = vsyncadd [#allocation3], %s25
      %s27 = sshll.u32 [#allocation2], 4
      %s28 = int_to_ptr.vmem [resolvable:$true] %s27
      %33 = dma.hbm_to_vmem [thread:$0]  %s2, 768, %s28, [#allocation3], 128, 128, 8
    $region13: #{tpu_custom_call.1} parent=1 // pred_fallthru
      _
    // Predicated region
    $region14: #{tpu_custom_call.1} parent=1 // pred_check
      _
    $region15: #{tpu_custom_call.1} parent=1 // pred_check_branch
      %35 = sbr.rel (0) target = $region17
    $region16: #{tpu_custom_call.1} parent=1 // pred_region
      _
    $region17: #{tpu_custom_call.1} parent=1 // pred_fallthru
      _
    // Predicated region
    $region18: #{tpu_custom_call.1} parent=1 // pred_check
      _
    $region19: #{tpu_custom_call.1} parent=1 // pred_check_branch
      %37 = sbr.rel (0) target = $region21
    $region20: #{tpu_custom_call.1} parent=1 // pred_region
      _
    $region21: #{tpu_custom_call.1} parent=1 // pred_fallthru
      _
    // Predicated region
    $region22: #{tpu_custom_call.1} parent=1 // pred_check
      _
    $region23: #{tpu_custom_call.1} parent=1 // pred_check_branch
      %39 = sbr.rel (0) target = $region25
    $region24: #{tpu_custom_call.1} parent=1 // pred_region
      _
    $region25: #{tpu_custom_call.1} parent=1 // pred_fallthru
      _
    // Predicated region
    $region26: #{tpu_custom_call.1} parent=1 // pred_check
      _
    $region27: #{tpu_custom_call.1} parent=1 // pred_check_branch
      %41 = sbr.rel (0) target = $region29
    $region28: #{tpu_custom_call.1} parent=1 // pred_region
      %42 = dma.done [#allocation3], 768
    $region29: #{tpu_custom_call.1} parent=1 // pred_fallthru
      _
    %v43 = vld [vmem:[#allocation2] sm:$0xff]
    %v44 = vld [vmem:[#allocation2 + $0x8] sm:$0xff]
    %v45 = vld [vmem:[#allocation2 + $0x10] sm:$0xff]
    %v46 = vld [vmem:[#allocation2 + $0x18] sm:$0xff]
    %v47 = vld [vmem:[#allocation2 + $0x20] sm:$0xff]
    %v48 = vld [vmem:[#allocation2 + $0x28] sm:$0xff]
    %v49 = vld [vmem:[%s0] sm:$0xff]
    %v50 = vld [vmem:[%s0 + $0x8] sm:$0xff]
    %v51 = vld [vmem:[%s3] sm:$0x1]
    %v53 = vlaneseq
    %v54 = vshrl.u32 %v53, 7
    %v55 = vsub.s32 0, %v54
    %v56 = vrot.slane %v51, %v55
    %vm58 = vcmask 130048
    %v60 = vsel %vm58, %v49, 0
    %v63 = vsel %vm58, %v50, 0
    %65 = vmatprep.subr.mxu0 0.0
    %66 = vmatpush1.msra.mxu0 %v43
    %67 = vmatprep.subr.mxu0 0.0
    %68 = vmatpush1.msra.mxu0 %v44
    %69 = vmatprep.subr.mxu0 0.0
    %70 = vmatpush1.msra.mxu0 0.0
    %71 = vmatprep.subr.mxu0 0.0
    %72 = vmatpush1.msra.mxu0 0.0
    %73 = vmatprep.subr.mxu0 0.0
    %74 = vmatpush1.msra.mxu0 0.0
    %75 = vmatprep.subr.mxu0 0.0
    %76 = vmatpush1.msra.mxu0 0.0
    %77 = vmatprep.subr.mxu0 0.0
    %78 = vmatpush1.msra.mxu0 0.0
    %79 = vmatprep.subr.mxu0 0.0
    %80 = vmatpush1.msra.mxu0 0.0
    %81 = vmatprep.subr.mxu0 0.0
    %82 = vmatpush1.msra.mxu0 0.0
    %83 = vmatprep.subr.mxu0 0.0
    %84 = vmatpush1.msra.mxu0 0.0
    %85 = vmatprep.subr.mxu0 0.0
    %86 = vmatpush1.msra.mxu0 0.0
    %87 = vmatprep.subr.mxu0 0.0
    %88 = vmatpush1.msra.mxu0 0.0
    %89 = vmatprep.subr.mxu0 0.0
    %90 = vmatpush1.msra.mxu0 0.0
    %91 = vmatprep.subr.mxu0 0.0
    %92 = vmatpush1.msra.mxu0 0.0
    %93 = vmatprep.subr.mxu0 0.0
    %94 = vmatpush1.msra.mxu0 0.0
    %95 = vmatprep.subr.mxu0 0.0
    %96 = vmatpush1.msra.mxu0 0.0
    %97 = vmatprep.subr.mxu0 0.0
    %98 = vmatpush1.msra.mxu0 0.0
    %99 = vmatprep.subr.mxu0 0.0
    %100 = vmatpush1.msra.mxu0 0.0
    %101 = vmatprep.subr.mxu0 0.0
    %102 = vmatpush1.msra.mxu0 0.0
    %103 = vmatprep.subr.mxu0 0.0
    %104 = vmatpush1.msra.mxu0 0.0
    %105 = vmatprep.subr.mxu0 0.0
    %106 = vmatpush1.msra.mxu0 0.0
    %107 = vmatprep.subr.mxu0 0.0
    %108 = vmatpush1.msra.mxu0 0.0
    %109 = vmatprep.subr.mxu0 0.0
    %110 = vmatpush1.msra.mxu0 0.0
    %111 = vmatprep.subr.mxu0 0.0
    %112 = vmatpush1.msra.mxu0 0.0
    %113 = vmatprep.subr.mxu0 0.0
    %114 = vmatpush1.msra.mxu0 0.0
    %115 = vmatprep.subr.mxu0 0.0
    %116 = vmatpush1.msra.mxu0 0.0
    %117 = vmatprep.subr.mxu0 0.0
    %118 = vmatpush1.msra.mxu0 0.0
    %119 = vmatprep.subr.mxu0 0.0
    %120 = vmatpush1.msra.mxu0 0.0
    %121 = vmatprep.subr.mxu0 0.0
    %122 = vmatpush1.msra.mxu0 0.0
    %123 = vmatprep.subr.mxu0 0.0
    %124 = vmatpush1.msra.mxu0 0.0
    %125 = vmatprep.subr.mxu0 0.0
    %126 = vmatpush1.msra.mxu0 0.0
    %127 = vmatprep.subr.mxu0 0.0
    %128 = vmatpush1.msra.mxu0 0.0
    %129 = vmatprep.mubr.f32.mxu0 0.0
    %130 = vmatmul.mubr.f32.gmra.mrb[0].mxu0 %v60
    %v131 = vpop.f32.mrb[0].mxu0
    %v132 = vadd.f32 %v56, %v131
    %v133 = vpop.f32.mrb[0].mxu0
    %134 = vmatprep.mubr.f32.mxu0 0.0
    %135 = vmatmul.mubr.f32.gmra.mrb[0].mxu0 %v63
    %v136 = vpop.f32.mrb[0].mxu0
    %v137 = vadd.f32 %v56, %v136
    %v138 = vpop.f32.mrb[0].mxu0
    %139 = vdwg.mxu0
    %v140 = vld [vmem:[%s1] sm:$0x3]
    %vm141 = vcmask 261120
    %v143 = vsel %vm141, %v140, 0
    %145 = vmatprep.subr.mxu0 0.0
    %146 = vmatpush1.msra.mxu0 %v45
    %147 = vmatprep.subr.mxu0 0.0
    %148 = vmatpush1.msra.mxu0 %v46
    %149 = vmatprep.subr.mxu0 0.0
    %150 = vmatpush1.msra.mxu0 %v47
    %151 = vmatprep.subr.mxu0 0.0
    %152 = vmatpush1.msra.mxu0 %v48
    %153 = vmatprep.subr.mxu0 0.0
    %154 = vmatpush1.msra.mxu0 0.0
    %155 = vmatprep.subr.mxu0 0.0
    %156 = vmatpush1.msra.mxu0 0.0
    %157 = vmatprep.subr.mxu0 0.0
    %158 = vmatpush1.msra.mxu0 0.0
    %159 = vmatprep.subr.mxu0 0.0
    %160 = vmatpush1.msra.mxu0 0.0
    %161 = vmatprep.subr.mxu0 0.0
    %162 = vmatpush1.msra.mxu0 0.0
    %163 = vmatprep.subr.mxu0 0.0
    %164 = vmatpush1.msra.mxu0 0.0
    %165 = vmatprep.subr.mxu0 0.0
    %166 = vmatpush1.msra.mxu0 0.0
    %167 = vmatprep.subr.mxu0 0.0
    %168 = vmatpush1.msra.mxu0 0.0
    %169 = vmatprep.subr.mxu0 0.0
    %170 = vmatpush1.msra.mxu0 0.0
    %171 = vmatprep.subr.mxu0 0.0
    %172 = vmatpush1.msra.mxu0 0.0
    %173 = vmatprep.subr.mxu0 0.0
    %174 = vmatpush1.msra.mxu0 0.0
    %175 = vmatprep.subr.mxu0 0.0
    %176 = vmatpush1.msra.mxu0 0.0
    %177 = vmatprep.subr.mxu0 0.0
    %178 = vmatpush1.msra.mxu0 0.0
    %179 = vmatprep.subr.mxu0 0.0
    %180 = vmatpush1.msra.mxu0 0.0
    %181 = vmatprep.subr.mxu0 0.0
    %182 = vmatpush1.msra.mxu0 0.0
    %183 = vmatprep.subr.mxu0 0.0
    %184 = vmatpush1.msra.mxu0 0.0
    %185 = vmatprep.subr.mxu0 0.0
    %186 = vmatpush1.msra.mxu0 0.0
    %187 = vmatprep.subr.mxu0 0.0
    %188 = vmatpush1.msra.mxu0 0.0
    %189 = vmatprep.subr.mxu0 0.0
    %190 = vmatpush1.msra.mxu0 0.0
    %191 = vmatprep.subr.mxu0 0.0
    %192 = vmatpush1.msra.mxu0 0.0
    %193 = vmatprep.subr.mxu0 0.0
    %194 = vmatpush1.msra.mxu0 0.0
    %195 = vmatprep.subr.mxu0 0.0
    %196 = vmatpush1.msra.mxu0 0.0
    %197 = vmatprep.subr.mxu0 0.0
    %198 = vmatpush1.msra.mxu0 0.0
    %199 = vmatprep.subr.mxu0 0.0
    %200 = vmatpush1.msra.mxu0 0.0
    %201 = vmatprep.subr.mxu0 0.0
    %202 = vmatpush1.msra.mxu0 0.0
    %203 = vmatprep.subr.mxu0 0.0
    %204 = vmatpush1.msra.mxu0 0.0
    %205 = vmatprep.subr.mxu0 0.0
    %206 = vmatpush1.msra.mxu0 0.0
    %207 = vmatprep.subr.mxu0 0.0
    %208 = vmatpush1.msra.mxu0 0.0
    %209 = vmatprep.mubr.f32.mxu0 0.0
    %210 = vmatmul.mubr.f32.gmra.mrb[0].mxu0 %v143
    %v211 = vpop.f32.mrb[0].mxu0
    %v212 = vadd.f32 0.0, %v211
    %v213 = vpop.f32.mrb[0].mxu0
    %214 = vdwg.mxu0
    %v215 = vadd.f32 %v132, %v212
    %v216 = vxor.u32 %v215, 2147483648
    %v217 = vmul.f32 %v216, 1.442695
    %v218 = vpow.pop %v217
    %v219 = vadd.f32 %v218, 1.0
    %v220 = vrcp.pop %v219
    %v221 = vmul.f32 1.0, %v220
    %v222 = vtanh.pop %v215
    %v223 = vmul.f32 %v221, %v140
    %225 = vrot.lane.b32.xlu0 %v222, 64
    %v226 = vpop.permute.xlu0 %225
    %v228 = vmul.f32 %v221, %v226
    %230 = vrot.lane.b32.xlu0 %v228, 32
    %v231 = vpop.permute.xlu0 %230
    %v233 = vadd.f32 %v223, %v231
    %v234 = vtanh.pop %v233
    %236 = vrot.lane.b32.xlu0 %v234, 64
    %v237 = vpop.permute.xlu0 %236
    %v239 = vmul.f32 %v221, %v237
    %v240 = vadd.f32 %v239, 0.0
    %242 = vrot.lane.b32.xlu0 %v239, 32
    %v243 = vpop.permute.xlu0 %242
    %v244 = vsel %vm141, %v243, 0
    %246 = vmatprep.subr.mxu0 0.0
    %247 = vmatpush1.msra.mxu0 %v45
    %248 = vmatprep.subr.mxu0 0.0
    %249 = vmatpush1.msra.mxu0 %v46
    %250 = vmatprep.subr.mxu0 0.0
    %251 = vmatpush1.msra.mxu0 %v47
    %252 = vmatprep.subr.mxu0 0.0
    %253 = vmatpush1.msra.mxu0 %v48
    %254 = vmatprep.subr.mxu0 0.0
    %255 = vmatpush1.msra.mxu0 0.0
    %256 = vmatprep.subr.mxu0 0.0
    %257 = vmatpush1.msra.mxu0 0.0
    %258 = vmatprep.subr.mxu0 0.0
    %259 = vmatpush1.msra.mxu0 0.0
    %260 = vmatprep.subr.mxu0 0.0
    %261 = vmatpush1.msra.mxu0 0.0
    %262 = vmatprep.subr.mxu0 0.0
    %263 = vmatpush1.msra.mxu0 0.0
    %264 = vmatprep.subr.mxu0 0.0
    %265 = vmatpush1.msra.mxu0 0.0
    %266 = vmatprep.subr.mxu0 0.0
    %267 = vmatpush1.msra.mxu0 0.0
    %268 = vmatprep.subr.mxu0 0.0
    %269 = vmatpush1.msra.mxu0 0.0
    %270 = vmatprep.subr.mxu0 0.0
    %271 = vmatpush1.msra.mxu0 0.0
    %272 = vmatprep.subr.mxu0 0.0
    %273 = vmatpush1.msra.mxu0 0.0
    %274 = vmatprep.subr.mxu0 0.0
    %275 = vmatpush1.msra.mxu0 0.0
    %276 = vmatprep.subr.mxu0 0.0
    %277 = vmatpush1.msra.mxu0 0.0
    %278 = vmatprep.subr.mxu0 0.0
    %279 = vmatpush1.msra.mxu0 0.0
    %280 = vmatprep.subr.mxu0 0.0
    %281 = vmatpush1.msra.mxu0 0.0
    %282 = vmatprep.subr.mxu0 0.0
    %283 = vmatpush1.msra.mxu0 0.0
    %284 = vmatprep.subr.mxu0 0.0
    %285 = vmatpush1.msra.mxu0 0.0
    %286 = vmatprep.subr.mxu0 0.0
    %287 = vmatpush1.msra.mxu0 0.0
    %288 = vmatprep.subr.mxu0 0.0
    %289 = vmatpush1.msra.mxu0 0.0
    %290 = vmatprep.subr.mxu0 0.0
    %291 = vmatpush1.msra.mxu0 0.0
    %292 = vmatprep.subr.mxu0 0.0
    %293 = vmatpush1.msra.mxu0 0.0
    %294 = vmatprep.subr.mxu0 0.0
    %295 = vmatpush1.msra.mxu0 0.0
    %296 = vmatprep.subr.mxu0 0.0
    %297 = vmatpush1.msra.mxu0 0.0
    %298 = vmatprep.subr.mxu0 0.0
    %299 = vmatpush1.msra.mxu0 0.0
    %300 = vmatprep.subr.mxu0 0.0
    %301 = vmatpush1.msra.mxu0 0.0
    %302 = vmatprep.subr.mxu0 0.0
    %303 = vmatpush1.msra.mxu0 0.0
    %304 = vmatprep.subr.mxu0 0.0
    %305 = vmatpush1.msra.mxu0 0.0
    %306 = vmatprep.subr.mxu0 0.0
    %307 = vmatpush1.msra.mxu0 0.0
    %308 = vmatprep.subr.mxu0 0.0
    %309 = vmatpush1.msra.mxu0 0.0
    %310 = vmatprep.mubr.f32.mxu0 0.0
    %311 = vmatmul.mubr.f32.gmra.mrb[0].mxu0 %v244
    %v312 = vpop.f32.mrb[0].mxu0
    %v313 = vadd.f32 0.0, %v312
    %v314 = vpop.f32.mrb[0].mxu0
    %315 = vdwg.mxu0
    %v317 = vrot.slane %v313, 6
    %v319 = vadd.f32 %v132, %v317
    %v320 = vxor.u32 %v319, 2147483648
    %v321 = vmul.f32 %v320, 1.442695
    %v322 = vpow.pop %v321
    %v323 = vadd.f32 %v322, 1.0
    %v324 = vrcp.pop %v323
    %v325 = vmul.f32 1.0, %v324
    %v326 = vtanh.pop %v319
    %v328 = vrot.slane %v233, 6
    %v330 = vmul.f32 %v325, %v328
    %332 = vrot.lane.b32.xlu0 %v326, 64
    %v333 = vpop.permute.xlu0 %332
    %v335 = vmul.f32 %v325, %v333
    %337 = vrot.lane.b32.xlu0 %v335, 32
    %v338 = vpop.permute.xlu0 %337
    %v340 = vadd.f32 %v330, %v338
    %v341 = vtanh.pop %v340
    %343 = vrot.lane.b32.xlu0 %v341, 64
    %v344 = vpop.permute.xlu0 %343
    %v346 = vmul.f32 %v325, %v344
    %v348 = vrot.slane %v346, 2
    %v350 = vadd.f32 %v240, %v348
    %v351 = vmul.f32 %v350, 0.5
    %352 = vrot.lane.b32.xlu0 %v348, 32
    %v353 = vpop.permute.xlu0 %352
    %v354 = vsel %vm141, %v353, 0
    %356 = vmatprep.subr.mxu0 0.0
    %357 = vmatpush1.msra.mxu0 %v45
    %358 = vmatprep.subr.mxu0 0.0
    %359 = vmatpush1.msra.mxu0 %v46
    %360 = vmatprep.subr.mxu0 0.0
    %361 = vmatpush1.msra.mxu0 %v47
    %362 = vmatprep.subr.mxu0 0.0
    %363 = vmatpush1.msra.mxu0 %v48
    %364 = vmatprep.subr.mxu0 0.0
    %365 = vmatpush1.msra.mxu0 0.0
    %366 = vmatprep.subr.mxu0 0.0
    %367 = vmatpush1.msra.mxu0 0.0
    %368 = vmatprep.subr.mxu0 0.0
    %369 = vmatpush1.msra.mxu0 0.0
    %370 = vmatprep.subr.mxu0 0.0
    %371 = vmatpush1.msra.mxu0 0.0
    %372 = vmatprep.subr.mxu0 0.0
    %373 = vmatpush1.msra.mxu0 0.0
    %374 = vmatprep.subr.mxu0 0.0
    %375 = vmatpush1.msra.mxu0 0.0
    %376 = vmatprep.subr.mxu0 0.0
    %377 = vmatpush1.msra.mxu0 0.0
    %378 = vmatprep.subr.mxu0 0.0
    %379 = vmatpush1.msra.mxu0 0.0
    %380 = vmatprep.subr.mxu0 0.0
    %381 = vmatpush1.msra.mxu0 0.0
    %382 = vmatprep.subr.mxu0 0.0
    %383 = vmatpush1.msra.mxu0 0.0
    %384 = vmatprep.subr.mxu0 0.0
    %385 = vmatpush1.msra.mxu0 0.0
    %386 = vmatprep.subr.mxu0 0.0
    %387 = vmatpush1.msra.mxu0 0.0
    %388 = vmatprep.subr.mxu0 0.0
    %389 = vmatpush1.msra.mxu0 0.0
    %390 = vmatprep.subr.mxu0 0.0
    %391 = vmatpush1.msra.mxu0 0.0
    %392 = vmatprep.subr.mxu0 0.0
    %393 = vmatpush1.msra.mxu0 0.0
    %394 = vmatprep.subr.mxu0 0.0
    %395 = vmatpush1.msra.mxu0 0.0
    %396 = vmatprep.subr.mxu0 0.0
    %397 = vmatpush1.msra.mxu0 0.0
    %398 = vmatprep.subr.mxu0 0.0
    %399 = vmatpush1.msra.mxu0 0.0
    %400 = vmatprep.subr.mxu0 0.0
    %401 = vmatpush1.msra.mxu0 0.0
    %402 = vmatprep.subr.mxu0 0.0
    %403 = vmatpush1.msra.mxu0 0.0
    %404 = vmatprep.subr.mxu0 0.0
    %405 = vmatpush1.msra.mxu0 0.0
    %406 = vmatprep.subr.mxu0 0.0
    %407 = vmatpush1.msra.mxu0 0.0
    %408 = vmatprep.subr.mxu0 0.0
    %409 = vmatpush1.msra.mxu0 0.0
    %410 = vmatprep.subr.mxu0 0.0
    %411 = vmatpush1.msra.mxu0 0.0
    %412 = vmatprep.subr.mxu0 0.0
    %413 = vmatpush1.msra.mxu0 0.0
    %414 = vmatprep.subr.mxu0 0.0
    %415 = vmatpush1.msra.mxu0 0.0
    %416 = vmatprep.subr.mxu0 0.0
    %417 = vmatpush1.msra.mxu0 0.0
    %418 = vmatprep.subr.mxu0 0.0
    %419 = vmatpush1.msra.mxu0 0.0
    %420 = vmatprep.mubr.f32.mxu0 0.0
    %421 = vmatmul.mubr.f32.gmra.mrb[0].mxu0 %v354
    %v422 = vpop.f32.mrb[0].mxu0
    %v423 = vadd.f32 0.0, %v422
    %v424 = vpop.f32.mrb[0].mxu0
    %425 = vdwg.mxu0
    %v427 = vrot.slane %v423, 4
    %v429 = vadd.f32 %v132, %v427
    %v430 = vxor.u32 %v429, 2147483648
    %v431 = vmul.f32 %v430, 1.442695
    %v432 = vpow.pop %v431
    %v433 = vadd.f32 %v432, 1.0
    %v434 = vrcp.pop %v433
    %v435 = vmul.f32 1.0, %v434
    %v436 = vtanh.pop %v429
    %v438 = vrot.slane %v340, 6
    %v440 = vmul.f32 %v435, %v438
    %442 = vrot.lane.b32.xlu0 %v436, 64
    %v443 = vpop.permute.xlu0 %442
    %v445 = vmul.f32 %v435, %v443
    %447 = vrot.lane.b32.xlu0 %v445, 32
    %v448 = vpop.permute.xlu0 %447
    %v450 = vadd.f32 %v440, %v448
    %v451 = vtanh.pop %v450
    %453 = vrot.lane.b32.xlu0 %v451, 64
    %v454 = vpop.permute.xlu0 %453
    %v456 = vmul.f32 %v435, %v454
    %v458 = vrot.slane %v456, 4
    %v460 = vadd.f32 %v350, %v458
    %v461 = vmul.f32 %v460, 0.33333334
    %462 = vrot.lane.b32.xlu0 %v458, 32
    %v463 = vpop.permute.xlu0 %462
    %v464 = vsel %vm141, %v463, 0
    %466 = vmatprep.subr.mxu0 0.0
    %467 = vmatpush1.msra.mxu0 %v45
    %468 = vmatprep.subr.mxu0 0.0
    %469 = vmatpush1.msra.mxu0 %v46
    %470 = vmatprep.subr.mxu0 0.0
    %471 = vmatpush1.msra.mxu0 %v47
    %472 = vmatprep.subr.mxu0 0.0
    %473 = vmatpush1.msra.mxu0 %v48
    %474 = vmatprep.subr.mxu0 0.0
    %475 = vmatpush1.msra.mxu0 0.0
    %476 = vmatprep.subr.mxu0 0.0
    %477 = vmatpush1.msra.mxu0 0.0
    %478 = vmatprep.subr.mxu0 0.0
    %479 = vmatpush1.msra.mxu0 0.0
    %480 = vmatprep.subr.mxu0 0.0
    %481 = vmatpush1.msra.mxu0 0.0
    %482 = vmatprep.subr.mxu0 0.0
    %483 = vmatpush1.msra.mxu0 0.0
    %484 = vmatprep.subr.mxu0 0.0
    %485 = vmatpush1.msra.mxu0 0.0
    %486 = vmatprep.subr.mxu0 0.0
    %487 = vmatpush1.msra.mxu0 0.0
    %488 = vmatprep.subr.mxu0 0.0
    %489 = vmatpush1.msra.mxu0 0.0
    %490 = vmatprep.subr.mxu0 0.0
    %491 = vmatpush1.msra.mxu0 0.0
    %492 = vmatprep.subr.mxu0 0.0
    %493 = vmatpush1.msra.mxu0 0.0
    %494 = vmatprep.subr.mxu0 0.0
    %495 = vmatpush1.msra.mxu0 0.0
    %496 = vmatprep.subr.mxu0 0.0
    %497 = vmatpush1.msra.mxu0 0.0
    %498 = vmatprep.subr.mxu0 0.0
    %499 = vmatpush1.msra.mxu0 0.0
    %500 = vmatprep.subr.mxu0 0.0
    %501 = vmatpush1.msra.mxu0 0.0
    %502 = vmatprep.subr.mxu0 0.0
    %503 = vmatpush1.msra.mxu0 0.0
    %504 = vmatprep.subr.mxu0 0.0
    %505 = vmatpush1.msra.mxu0 0.0
    %506 = vmatprep.subr.mxu0 0.0
    %507 = vmatpush1.msra.mxu0 0.0
    %508 = vmatprep.subr.mxu0 0.0
    %509 = vmatpush1.msra.mxu0 0.0
    %510 = vmatprep.subr.mxu0 0.0
    %511 = vmatpush1.msra.mxu0 0.0
    %512 = vmatprep.subr.mxu0 0.0
    %513 = vmatpush1.msra.mxu0 0.0
    %514 = vmatprep.subr.mxu0 0.0
    %515 = vmatpush1.msra.mxu0 0.0
    %516 = vmatprep.subr.mxu0 0.0
    %517 = vmatpush1.msra.mxu0 0.0
    %518 = vmatprep.subr.mxu0 0.0
    %519 = vmatpush1.msra.mxu0 0.0
    %520 = vmatprep.subr.mxu0 0.0
    %521 = vmatpush1.msra.mxu0 0.0
    %522 = vmatprep.subr.mxu0 0.0
    %523 = vmatpush1.msra.mxu0 0.0
    %524 = vmatprep.subr.mxu0 0.0
    %525 = vmatpush1.msra.mxu0 0.0
    %526 = vmatprep.subr.mxu0 0.0
    %527 = vmatpush1.msra.mxu0 0.0
    %528 = vmatprep.subr.mxu0 0.0
    %529 = vmatpush1.msra.mxu0 0.0
    %530 = vmatprep.mubr.f32.mxu0 0.0
    %531 = vmatmul.mubr.f32.gmra.mrb[0].mxu0 %v464
    %v532 = vpop.f32.mrb[0].mxu0
    %v533 = vadd.f32 0.0, %v532
    %v534 = vpop.f32.mrb[0].mxu0
    %535 = vdwg.mxu0
    %v537 = vrot.slane %v533, 2
    %v539 = vadd.f32 %v132, %v537
    %v540 = vxor.u32 %v539, 2147483648
    %v541 = vmul.f32 %v540, 1.442695
    %v542 = vpow.pop %v541
    %v543 = vadd.f32 %v542, 1.0
    %v544 = vrcp.pop %v543
    %v545 = vmul.f32 1.0, %v544
    %v546 = vtanh.pop %v539
    %v548 = vrot.slane %v450, 6
    %v550 = vmul.f32 %v545, %v548
    %552 = vrot.lane.b32.xlu0 %v546, 64
    %v553 = vpop.permute.xlu0 %552
    %v555 = vmul.f32 %v545, %v553
    %557 = vrot.lane.b32.xlu0 %v555, 32
    %v558 = vpop.permute.xlu0 %557
    %v560 = vadd.f32 %v550, %v558
    %v561 = vtanh.pop %v560
    %563 = vrot.lane.b32.xlu0 %v561, 64
    %v564 = vpop.permute.xlu0 %563
    %v566 = vmul.f32 %v545, %v564
    %v568 = vrot.slane %v566, 6
    %v570 = vadd.f32 %v460, %v568
    %v571 = vmul.f32 %v570, 0.25
    %572 = vrot.lane.b32.xlu0 %v568, 32
    %v573 = vpop.permute.xlu0 %572
    %v574 = vsel %vm141, %v573, 0
    %576 = vmatprep.subr.mxu0 0.0
    %577 = vmatpush1.msra.mxu0 %v45
    %578 = vmatprep.subr.mxu0 0.0
    %579 = vmatpush1.msra.mxu0 %v46
    %580 = vmatprep.subr.mxu0 0.0
    %581 = vmatpush1.msra.mxu0 %v47
    %582 = vmatprep.subr.mxu0 0.0
    %583 = vmatpush1.msra.mxu0 %v48
    %584 = vmatprep.subr.mxu0 0.0
    %585 = vmatpush1.msra.mxu0 0.0
    %586 = vmatprep.subr.mxu0 0.0
    %587 = vmatpush1.msra.mxu0 0.0
    %588 = vmatprep.subr.mxu0 0.0
    %589 = vmatpush1.msra.mxu0 0.0
    %590 = vmatprep.subr.mxu0 0.0
    %591 = vmatpush1.msra.mxu0 0.0
    %592 = vmatprep.subr.mxu0 0.0
    %593 = vmatpush1.msra.mxu0 0.0
    %594 = vmatprep.subr.mxu0 0.0
    %595 = vmatpush1.msra.mxu0 0.0
    %596 = vmatprep.subr.mxu0 0.0
    %597 = vmatpush1.msra.mxu0 0.0
    %598 = vmatprep.subr.mxu0 0.0
    %599 = vmatpush1.msra.mxu0 0.0
    %600 = vmatprep.subr.mxu0 0.0
    %601 = vmatpush1.msra.mxu0 0.0
    %602 = vmatprep.subr.mxu0 0.0
    %603 = vmatpush1.msra.mxu0 0.0
    %604 = vmatprep.subr.mxu0 0.0
    %605 = vmatpush1.msra.mxu0 0.0
    %606 = vmatprep.subr.mxu0 0.0
    %607 = vmatpush1.msra.mxu0 0.0
    %608 = vmatprep.subr.mxu0 0.0
    %609 = vmatpush1.msra.mxu0 0.0
    %610 = vmatprep.subr.mxu0 0.0
    %611 = vmatpush1.msra.mxu0 0.0
    %612 = vmatprep.subr.mxu0 0.0
    %613 = vmatpush1.msra.mxu0 0.0
    %614 = vmatprep.subr.mxu0 0.0
    %615 = vmatpush1.msra.mxu0 0.0
    %616 = vmatprep.subr.mxu0 0.0
    %617 = vmatpush1.msra.mxu0 0.0
    %618 = vmatprep.subr.mxu0 0.0
    %619 = vmatpush1.msra.mxu0 0.0
    %620 = vmatprep.subr.mxu0 0.0
    %621 = vmatpush1.msra.mxu0 0.0
    %622 = vmatprep.subr.mxu0 0.0
    %623 = vmatpush1.msra.mxu0 0.0
    %624 = vmatprep.subr.mxu0 0.0
    %625 = vmatpush1.msra.mxu0 0.0
    %626 = vmatprep.subr.mxu0 0.0
    %627 = vmatpush1.msra.mxu0 0.0
    %628 = vmatprep.subr.mxu0 0.0
    %629 = vmatpush1.msra.mxu0 0.0
    %630 = vmatprep.subr.mxu0 0.0
    %631 = vmatpush1.msra.mxu0 0.0
    %632 = vmatprep.subr.mxu0 0.0
    %633 = vmatpush1.msra.mxu0 0.0
    %634 = vmatprep.subr.mxu0 0.0
    %635 = vmatpush1.msra.mxu0 0.0
    %636 = vmatprep.subr.mxu0 0.0
    %637 = vmatpush1.msra.mxu0 0.0
    %638 = vmatprep.subr.mxu0 0.0
    %639 = vmatpush1.msra.mxu0 0.0
    %640 = vmatprep.mubr.f32.mxu0 0.0
    %641 = vmatmul.mubr.f32.gmra.mrb[0].mxu0 %v574
    %v642 = vpop.f32.mrb[0].mxu0
    %v643 = vadd.f32 0.0, %v642
    %v644 = vpop.f32.mrb[0].mxu0
    %645 = vdwg.mxu0
    %v646 = vadd.f32 %v137, %v643
    %v647 = vxor.u32 %v646, 2147483648
    %v648 = vmul.f32 %v647, 1.442695
    %v649 = vpow.pop %v648
    %v650 = vadd.f32 %v649, 1.0
    %v651 = vrcp.pop %v650
    %v652 = vmul.f32 1.0, %v651
    %v653 = vtanh.pop %v646
    %v655 = vrot.slane %v560, 6
    %v657 = vmul.f32 %v652, %v655
    %659 = vrot.lane.b32.xlu0 %v653, 64
    %v660 = vpop.permute.xlu0 %659
    %v662 = vmul.f32 %v652, %v660
    %664 = vrot.lane.b32.xlu0 %v662, 32
    %v665 = vpop.permute.xlu0 %664
    %v667 = vadd.f32 %v657, %v665
    %v668 = vtanh.pop %v667
    %670 = vrot.lane.b32.xlu0 %v668, 64
    %v671 = vpop.permute.xlu0 %670
    %v673 = vmul.f32 %v652, %v671
    %v674 = vadd.f32 %v570, %v673
    %v675 = vmul.f32 %v674, 0.2
    %677 = vrot.lane.b32.xlu0 %v673, 32
    %v678 = vpop.permute.xlu0 %677
    %v679 = vsel %vm141, %v678, 0
    %681 = vmatprep.subr.mxu0 0.0
    %682 = vmatpush1.msra.mxu0 %v45
    %683 = vmatprep.subr.mxu0 0.0
    %684 = vmatpush1.msra.mxu0 %v46
    %685 = vmatprep.subr.mxu0 0.0
    %686 = vmatpush1.msra.mxu0 %v47
    %687 = vmatprep.subr.mxu0 0.0
    %688 = vmatpush1.msra.mxu0 %v48
    %689 = vmatprep.subr.mxu0 0.0
    %690 = vmatpush1.msra.mxu0 0.0
    %691 = vmatprep.subr.mxu0 0.0
    %692 = vmatpush1.msra.mxu0 0.0
    %693 = vmatprep.subr.mxu0 0.0
    %694 = vmatpush1.msra.mxu0 0.0
    %695 = vmatprep.subr.mxu0 0.0
    %696 = vmatpush1.msra.mxu0 0.0
    %697 = vmatprep.subr.mxu0 0.0
    %698 = vmatpush1.msra.mxu0 0.0
    %699 = vmatprep.subr.mxu0 0.0
    %700 = vmatpush1.msra.mxu0 0.0
    %701 = vmatprep.subr.mxu0 0.0
    %702 = vmatpush1.msra.mxu0 0.0
    %703 = vmatprep.subr.mxu0 0.0
    %704 = vmatpush1.msra.mxu0 0.0
    %705 = vmatprep.subr.mxu0 0.0
    %706 = vmatpush1.msra.mxu0 0.0
    %707 = vmatprep.subr.mxu0 0.0
    %708 = vmatpush1.msra.mxu0 0.0
    %709 = vmatprep.subr.mxu0 0.0
    %710 = vmatpush1.msra.mxu0 0.0
    %711 = vmatprep.subr.mxu0 0.0
    %712 = vmatpush1.msra.mxu0 0.0
    %713 = vmatprep.subr.mxu0 0.0
    %714 = vmatpush1.msra.mxu0 0.0
    %715 = vmatprep.subr.mxu0 0.0
    %716 = vmatpush1.msra.mxu0 0.0
    %717 = vmatprep.subr.mxu0 0.0
    %718 = vmatpush1.msra.mxu0 0.0
    %719 = vmatprep.subr.mxu0 0.0
    %720 = vmatpush1.msra.mxu0 0.0
    %721 = vmatprep.subr.mxu0 0.0
    %722 = vmatpush1.msra.mxu0 0.0
    %723 = vmatprep.subr.mxu0 0.0
    %724 = vmatpush1.msra.mxu0 0.0
    %725 = vmatprep.subr.mxu0 0.0
    %726 = vmatpush1.msra.mxu0 0.0
    %727 = vmatprep.subr.mxu0 0.0
    %728 = vmatpush1.msra.mxu0 0.0
    %729 = vmatprep.subr.mxu0 0.0
    %730 = vmatpush1.msra.mxu0 0.0
    %731 = vmatprep.subr.mxu0 0.0
    %732 = vmatpush1.msra.mxu0 0.0
    %733 = vmatprep.subr.mxu0 0.0
    %734 = vmatpush1.msra.mxu0 0.0
    %735 = vmatprep.subr.mxu0 0.0
    %736 = vmatpush1.msra.mxu0 0.0
    %737 = vmatprep.subr.mxu0 0.0
    %738 = vmatpush1.msra.mxu0 0.0
    %739 = vmatprep.subr.mxu0 0.0
    %740 = vmatpush1.msra.mxu0 0.0
    %741 = vmatprep.subr.mxu0 0.0
    %742 = vmatpush1.msra.mxu0 0.0
    %743 = vmatprep.subr.mxu0 0.0
    %744 = vmatpush1.msra.mxu0 0.0
    %745 = vmatprep.mubr.f32.mxu0 0.0
    %746 = vmatmul.mubr.f32.gmra.mrb[0].mxu0 %v679
    %v747 = vpop.f32.mrb[0].mxu0
    %v748 = vadd.f32 0.0, %v747
    %v749 = vpop.f32.mrb[0].mxu0
    %750 = vdwg.mxu0
    %v752 = vrot.slane %v748, 6
    %v754 = vadd.f32 %v137, %v752
    %v755 = vxor.u32 %v754, 2147483648
    %v756 = vmul.f32 %v755, 1.442695
    %v757 = vpow.pop %v756
    %v758 = vadd.f32 %v757, 1.0
    %v759 = vrcp.pop %v758
    %v760 = vmul.f32 1.0, %v759
    %v761 = vtanh.pop %v754
    %v763 = vrot.slane %v667, 6
    %v765 = vmul.f32 %v760, %v763
    %767 = vrot.lane.b32.xlu0 %v761, 64
    %v768 = vpop.permute.xlu0 %767
    %v770 = vmul.f32 %v760, %v768
    %772 = vrot.lane.b32.xlu0 %v770, 32
    %v773 = vpop.permute.xlu0 %772
    %v775 = vadd.f32 %v765, %v773
    %v776 = vtanh.pop %v775
    %778 = vrot.lane.b32.xlu0 %v776, 64
    %v779 = vpop.permute.xlu0 %778
    %v781 = vmul.f32 %v760, %v779
    %v783 = vrot.slane %v781, 2
    %v785 = vadd.f32 %v674, %v783
    %v786 = vmul.f32 %v785, 0.16666667
    %787 = vrot.lane.b32.xlu0 %v783, 32
    %v788 = vpop.permute.xlu0 %787
    %v789 = vsel %vm141, %v788, 0
    %791 = vmatprep.subr.mxu0 0.0
    %792 = vmatpush1.msra.mxu0 %v45
    %793 = vmatprep.subr.mxu0 0.0
    %794 = vmatpush1.msra.mxu0 %v46
    %795 = vmatprep.subr.mxu0 0.0
    %796 = vmatpush1.msra.mxu0 %v47
    %797 = vmatprep.subr.mxu0 0.0
    %798 = vmatpush1.msra.mxu0 %v48
    %799 = vmatprep.subr.mxu0 0.0
    %800 = vmatpush1.msra.mxu0 0.0
    %801 = vmatprep.subr.mxu0 0.0
    %802 = vmatpush1.msra.mxu0 0.0
    %803 = vmatprep.subr.mxu0 0.0
    %804 = vmatpush1.msra.mxu0 0.0
    %805 = vmatprep.subr.mxu0 0.0
    %806 = vmatpush1.msra.mxu0 0.0
    %807 = vmatprep.subr.mxu0 0.0
    %808 = vmatpush1.msra.mxu0 0.0
    %809 = vmatprep.subr.mxu0 0.0
    %810 = vmatpush1.msra.mxu0 0.0
    %811 = vmatprep.subr.mxu0 0.0
    %812 = vmatpush1.msra.mxu0 0.0
    %813 = vmatprep.subr.mxu0 0.0
    %814 = vmatpush1.msra.mxu0 0.0
    %815 = vmatprep.subr.mxu0 0.0
    %816 = vmatpush1.msra.mxu0 0.0
    %817 = vmatprep.subr.mxu0 0.0
    %818 = vmatpush1.msra.mxu0 0.0
    %819 = vmatprep.subr.mxu0 0.0
    %820 = vmatpush1.msra.mxu0 0.0
    %821 = vmatprep.subr.mxu0 0.0
    %822 = vmatpush1.msra.mxu0 0.0
    %823 = vmatprep.subr.mxu0 0.0
    %824 = vmatpush1.msra.mxu0 0.0
    %825 = vmatprep.subr.mxu0 0.0
    %826 = vmatpush1.msra.mxu0 0.0
    %827 = vmatprep.subr.mxu0 0.0
    %828 = vmatpush1.msra.mxu0 0.0
    %829 = vmatprep.subr.mxu0 0.0
    %830 = vmatpush1.msra.mxu0 0.0
    %831 = vmatprep.subr.mxu0 0.0
    %832 = vmatpush1.msra.mxu0 0.0
    %833 = vmatprep.subr.mxu0 0.0
    %834 = vmatpush1.msra.mxu0 0.0
    %835 = vmatprep.subr.mxu0 0.0
    %836 = vmatpush1.msra.mxu0 0.0
    %837 = vmatprep.subr.mxu0 0.0
    %838 = vmatpush1.msra.mxu0 0.0
    %839 = vmatprep.subr.mxu0 0.0
    %840 = vmatpush1.msra.mxu0 0.0
    %841 = vmatprep.subr.mxu0 0.0
    %842 = vmatpush1.msra.mxu0 0.0
    %843 = vmatprep.subr.mxu0 0.0
    %844 = vmatpush1.msra.mxu0 0.0
    %845 = vmatprep.subr.mxu0 0.0
    %846 = vmatpush1.msra.mxu0 0.0
    %847 = vmatprep.subr.mxu0 0.0
    %848 = vmatpush1.msra.mxu0 0.0
    %849 = vmatprep.subr.mxu0 0.0
    %850 = vmatpush1.msra.mxu0 0.0
    %851 = vmatprep.subr.mxu0 0.0
    %852 = vmatpush1.msra.mxu0 0.0
    %853 = vmatprep.subr.mxu0 0.0
    %854 = vmatpush1.msra.mxu0 0.0
    %855 = vmatprep.mubr.f32.mxu0 0.0
    %856 = vmatmul.mubr.f32.gmra.mrb[0].mxu0 %v789
    %v857 = vpop.f32.mrb[0].mxu0
    %v858 = vadd.f32 0.0, %v857
    %v859 = vpop.f32.mrb[0].mxu0
    %860 = vdwg.mxu0
    %v862 = vrot.slane %v858, 4
    %v864 = vadd.f32 %v137, %v862
    %v865 = vxor.u32 %v864, 2147483648
    %v866 = vmul.f32 %v865, 1.442695
    %v867 = vpow.pop %v866
    %v868 = vadd.f32 %v867, 1.0
    %v869 = vrcp.pop %v868
    %v870 = vmul.f32 1.0, %v869
    %v871 = vtanh.pop %v864
    %v873 = vrot.slane %v775, 6
    %v875 = vmul.f32 %v870, %v873
    %877 = vrot.lane.b32.xlu0 %v871, 64
    %v878 = vpop.permute.xlu0 %877
    %v880 = vmul.f32 %v870, %v878
    %882 = vrot.lane.b32.xlu0 %v880, 32
    %v883 = vpop.permute.xlu0 %882
    %v885 = vadd.f32 %v875, %v883
    %v886 = vtanh.pop %v885
    %888 = vrot.lane.b32.xlu0 %v886, 64
    %v889 = vpop.permute.xlu0 %888
    %v891 = vmul.f32 %v870, %v889
    %v893 = vrot.slane %v891, 4
    %v895 = vadd.f32 %v785, %v893
    %v896 = vmul.f32 %v895, 0.14285715
    %897 = vrot.lane.b32.xlu0 %v893, 32
    %v898 = vpop.permute.xlu0 %897
    %v899 = vsel %vm141, %v898, 0
    %901 = vmatprep.subr.mxu0 0.0
    %902 = vmatpush1.msra.mxu0 %v45
    %903 = vmatprep.subr.mxu0 0.0
    %904 = vmatpush1.msra.mxu0 %v46
    %905 = vmatprep.subr.mxu0 0.0
    %906 = vmatpush1.msra.mxu0 %v47
    %907 = vmatprep.subr.mxu0 0.0
    %908 = vmatpush1.msra.mxu0 %v48
    %909 = vmatprep.subr.mxu0 0.0
    %910 = vmatpush1.msra.mxu0 0.0
    %911 = vmatprep.subr.mxu0 0.0
    %912 = vmatpush1.msra.mxu0 0.0
    %913 = vmatprep.subr.mxu0 0.0
    %914 = vmatpush1.msra.mxu0 0.0
    %915 = vmatprep.subr.mxu0 0.0
    %916 = vmatpush1.msra.mxu0 0.0
    %917 = vmatprep.subr.mxu0 0.0
    %918 = vmatpush1.msra.mxu0 0.0
    %919 = vmatprep.subr.mxu0 0.0
    %920 = vmatpush1.msra.mxu0 0.0
    %921 = vmatprep.subr.mxu0 0.0
    %922 = vmatpush1.msra.mxu0 0.0
    %923 = vmatprep.subr.mxu0 0.0
    %924 = vmatpush1.msra.mxu0 0.0
    %925 = vmatprep.subr.mxu0 0.0
    %926 = vmatpush1.msra.mxu0 0.0
    %927 = vmatprep.subr.mxu0 0.0
    %928 = vmatpush1.msra.mxu0 0.0
    %929 = vmatprep.subr.mxu0 0.0
    %930 = vmatpush1.msra.mxu0 0.0
    %931 = vmatprep.subr.mxu0 0.0
    %932 = vmatpush1.msra.mxu0 0.0
    %933 = vmatprep.subr.mxu0 0.0
    %934 = vmatpush1.msra.mxu0 0.0
    %935 = vmatprep.subr.mxu0 0.0
    %936 = vmatpush1.msra.mxu0 0.0
    %937 = vmatprep.subr.mxu0 0.0
    %938 = vmatpush1.msra.mxu0 0.0
    %939 = vmatprep.subr.mxu0 0.0
    %940 = vmatpush1.msra.mxu0 0.0
    %941 = vmatprep.subr.mxu0 0.0
    %942 = vmatpush1.msra.mxu0 0.0
    %943 = vmatprep.subr.mxu0 0.0
    %944 = vmatpush1.msra.mxu0 0.0
    %945 = vmatprep.subr.mxu0 0.0
    %946 = vmatpush1.msra.mxu0 0.0
    %947 = vmatprep.subr.mxu0 0.0
    %948 = vmatpush1.msra.mxu0 0.0
    %949 = vmatprep.subr.mxu0 0.0
    %950 = vmatpush1.msra.mxu0 0.0
    %951 = vmatprep.subr.mxu0 0.0
    %952 = vmatpush1.msra.mxu0 0.0
    %953 = vmatprep.subr.mxu0 0.0
    %954 = vmatpush1.msra.mxu0 0.0
    %955 = vmatprep.subr.mxu0 0.0
    %956 = vmatpush1.msra.mxu0 0.0
    %957 = vmatprep.subr.mxu0 0.0
    %958 = vmatpush1.msra.mxu0 0.0
    %959 = vmatprep.subr.mxu0 0.0
    %960 = vmatpush1.msra.mxu0 0.0
    %961 = vmatprep.subr.mxu0 0.0
    %962 = vmatpush1.msra.mxu0 0.0
    %963 = vmatprep.subr.mxu0 0.0
    %964 = vmatpush1.msra.mxu0 0.0
    %965 = vmatprep.mubr.f32.mxu0 0.0
    %966 = vmatmul.mubr.f32.gmra.mrb[0].mxu0 %v899
    %v967 = vpop.f32.mrb[0].mxu0
    %v968 = vadd.f32 0.0, %v967
    %v969 = vpop.f32.mrb[0].mxu0
    %970 = vdwg.mxu0
    %v972 = vrot.slane %v968, 2
    %v974 = vadd.f32 %v137, %v972
    %v975 = vxor.u32 %v974, 2147483648
    %v976 = vmul.f32 %v975, 1.442695
    %v977 = vpow.pop %v976
    %v978 = vadd.f32 %v977, 1.0
    %v979 = vrcp.pop %v978
    %v980 = vmul.f32 1.0, %v979
    %v981 = vtanh.pop %v974
    %v983 = vrot.slane %v885, 6
    %v985 = vmul.f32 %v980, %v983
    %987 = vrot.lane.b32.xlu0 %v981, 64
    %v988 = vpop.permute.xlu0 %987
    %v990 = vmul.f32 %v980, %v988
    %992 = vrot.lane.b32.xlu0 %v990, 32
    %v993 = vpop.permute.xlu0 %992
    %v995 = vadd.f32 %v985, %v993
    %v996 = vtanh.pop %v995
    %998 = vrot.lane.b32.xlu0 %v996, 64
    %v999 = vpop.permute.xlu0 %998
    %v1001 = vmul.f32 %v980, %v999
    %v1003 = vrot.slane %v1001, 6
    %v1005 = vadd.f32 %v895, %v1003
    %v1006 = vmul.f32 %v1005, 0.125
    %v1008 = vrot.slane %v351, 6
    %v1011 = vrot.slane %v461, 4
    %v1014 = vrot.slane %v571, 2
    %v1017 = vrot.slane %v786, 6
    %v1020 = vrot.slane %v896, 4
    %v1023 = vrot.slane %v1006, 2
    %vm1025 = vcmask 1041408
    %v1026 = vsel %vm1025, %v240, %v1008
    %vm1027 = vcmask 1043456
    %v1028 = vsel %vm1027, %v1026, %v1011
    %vm1029 = vcmask 1045504
    %v1030 = vsel %vm1029, %v1028, %v1014
    %v1031 = vsel %vm1025, %v675, %v1017
    %v1032 = vsel %vm1027, %v1031, %v1020
    %v1033 = vsel %vm1029, %v1032, %v1023
    %v1034 = vld [vmem:[%s4] sm:$0xff]
    %v1035 = vld [vmem:[%s4 + $0x8] sm:$0xff]
    %v1036 = vld [vmem:[%s4 + $0x10] sm:$0xff]
    %v1037 = vld [vmem:[%s4 + $0x18] sm:$0xff]
    %v1038 = vld [vmem:[%s5] sm:$0x1]
    %v1040 = vlaneseq
    %v1041 = vshrl.u32 %v1040, 7
    %v1042 = vsub.s32 0, %v1041
    %v1043 = vrot.slane %v1038, %v1042
    %1047 = vrot.lane.b32.xlu0 %v1030, 32
    %v1048 = vpop.permute.xlu0 %1047
    %1049 = vrot.lane.b32.xlu0 %v1033, 32
    %v1050 = vpop.permute.xlu0 %1049
    %v1051 = vsel %vm141, %v1048, 0
    %v1053 = vsel %vm141, %v1050, 0
    %1055 = vmatprep.subr.mxu0 0.0
    %1056 = vmatpush1.msra.mxu0 %v1034
    %1057 = vmatprep.subr.mxu0 0.0
    %1058 = vmatpush1.msra.mxu0 %v1035
    %1059 = vmatprep.subr.mxu0 0.0
    %1060 = vmatpush1.msra.mxu0 %v1036
    %1061 = vmatprep.subr.mxu0 0.0
    %1062 = vmatpush1.msra.mxu0 %v1037
    %1063 = vmatprep.subr.mxu0 0.0
    %1064 = vmatpush1.msra.mxu0 0.0
    %1065 = vmatprep.subr.mxu0 0.0
    %1066 = vmatpush1.msra.mxu0 0.0
    %1067 = vmatprep.subr.mxu0 0.0
    %1068 = vmatpush1.msra.mxu0 0.0
    %1069 = vmatprep.subr.mxu0 0.0
    %1070 = vmatpush1.msra.mxu0 0.0
    %1071 = vmatprep.subr.mxu0 0.0
    %1072 = vmatpush1.msra.mxu0 0.0
    %1073 = vmatprep.subr.mxu0 0.0
    %1074 = vmatpush1.msra.mxu0 0.0
    %1075 = vmatprep.subr.mxu0 0.0
    %1076 = vmatpush1.msra.mxu0 0.0
    %1077 = vmatprep.subr.mxu0 0.0
    %1078 = vmatpush1.msra.mxu0 0.0
    %1079 = vmatprep.subr.mxu0 0.0
    %1080 = vmatpush1.msra.mxu0 0.0
    %1081 = vmatprep.subr.mxu0 0.0
    %1082 = vmatpush1.msra.mxu0 0.0
    %1083 = vmatprep.subr.mxu0 0.0
    %1084 = vmatpush1.msra.mxu0 0.0
    %1085 = vmatprep.subr.mxu0 0.0
    %1086 = vmatpush1.msra.mxu0 0.0
    %1087 = vmatprep.subr.mxu0 0.0
    %1088 = vmatpush1.msra.mxu0 0.0
    %1089 = vmatprep.subr.mxu0 0.0
    %1090 = vmatpush1.msra.mxu0 0.0
    %1091 = vmatprep.subr.mxu0 0.0
    %1092 = vmatpush1.msra.mxu0 0.0
    %1093 = vmatprep.subr.mxu0 0.0
    %1094 = vmatpush1.msra.mxu0 0.0
    %1095 = vmatprep.subr.mxu0 0.0
    %1096 = vmatpush1.msra.mxu0 0.0
    %1097 = vmatprep.subr.mxu0 0.0
    %1098 = vmatpush1.msra.mxu0 0.0
    %1099 = vmatprep.subr.mxu0 0.0
    %1100 = vmatpush1.msra.mxu0 0.0
    %1101 = vmatprep.subr.mxu0 0.0
    %1102 = vmatpush1.msra.mxu0 0.0
    %1103 = vmatprep.subr.mxu0 0.0
    %1104 = vmatpush1.msra.mxu0 0.0
    %1105 = vmatprep.subr.mxu0 0.0
    %1106 = vmatpush1.msra.mxu0 0.0
    %1107 = vmatprep.subr.mxu0 0.0
    %1108 = vmatpush1.msra.mxu0 0.0
    %1109 = vmatprep.subr.mxu0 0.0
    %1110 = vmatpush1.msra.mxu0 0.0
    %1111 = vmatprep.subr.mxu0 0.0
    %1112 = vmatpush1.msra.mxu0 0.0
    %1113 = vmatprep.subr.mxu0 0.0
    %1114 = vmatpush1.msra.mxu0 0.0
    %1115 = vmatprep.subr.mxu0 0.0
    %1116 = vmatpush1.msra.mxu0 0.0
    %1117 = vmatprep.subr.mxu0 0.0
    %1118 = vmatpush1.msra.mxu0 0.0
    %1119 = vmatprep.mubr.f32.mxu0 0.0
    %1120 = vmatmul.mubr.f32.gmra.mrb[0].mxu0 %v1051
    %v1121 = vpop.f32.mrb[0].mxu0
    %v1122 = vadd.f32 %v1043, %v1121
    %v1123 = vpop.f32.mrb[0].mxu0
    %1124 = vmatprep.mubr.f32.mxu0 0.0
    %1125 = vmatmul.mubr.f32.gmra.mrb[0].mxu0 %v1053
    %v1126 = vpop.f32.mrb[0].mxu0
    %v1127 = vadd.f32 %v1043, %v1126
    %v1128 = vpop.f32.mrb[0].mxu0
    %1129 = vdwg.mxu0
    %vm1130 = vcmask 17416
    %v1131 = vsel %vm1130, %v1122, 0.0
    %v1132 = vrot.slane %v1131, 4
    %v1133 = vadd.f32 %v1131, %v1132
    %v1134 = vrot.slane %v1133, 2
    %v1135 = vadd.f32 %v1133, %v1134
    %v1136 = vrot.slane %v1135, 1
    %v1137 = vadd.f32 %v1135, %v1136
    %v1138 = vrcp.pop 2.0
    %v1139 = vmul.f32 %v1137, %v1138
    %v1141 = vrot.slane %v1122, 2
    %v1143 = vsel %vm1130, %v1141, 0.0
    %v1144 = vrot.slane %v1143, 4
    %v1145 = vadd.f32 %v1143, %v1144
    %v1146 = vrot.slane %v1145, 2
    %v1147 = vadd.f32 %v1145, %v1146
    %v1148 = vrot.slane %v1147, 1
    %v1149 = vadd.f32 %v1147, %v1148
    %v1150 = vmul.f32 %v1149, %v1138
    %v1151 = vrot.slane %v1122, 4
    %v1153 = vsel %vm1130, %v1151, 0.0
    %v1154 = vrot.slane %v1153, 4
    %v1155 = vadd.f32 %v1153, %v1154
    %v1156 = vrot.slane %v1155, 2
    %v1157 = vadd.f32 %v1155, %v1156
    %v1158 = vrot.slane %v1157, 1
    %v1159 = vadd.f32 %v1157, %v1158
    %v1160 = vmul.f32 %v1159, %v1138
    %v1161 = vrot.slane %v1122, 6
    %v1163 = vsel %vm1130, %v1161, 0.0
    %v1164 = vrot.slane %v1163, 4
    %v1165 = vadd.f32 %v1163, %v1164
    %v1166 = vrot.slane %v1165, 2
    %v1167 = vadd.f32 %v1165, %v1166
    %v1168 = vrot.slane %v1167, 1
    %v1169 = vadd.f32 %v1167, %v1168
    %v1170 = vmul.f32 %v1169, %v1138
    %v1171 = vsel %vm1130, %v1127, 0.0
    %v1172 = vrot.slane %v1171, 4
    %v1173 = vadd.f32 %v1171, %v1172
    %v1174 = vrot.slane %v1173, 2
    %v1175 = vadd.f32 %v1173, %v1174
    %v1176 = vrot.slane %v1175, 1
    %v1177 = vadd.f32 %v1175, %v1176
    %v1178 = vmul.f32 %v1177, %v1138
    %v1180 = vrot.slane %v1127, 2
    %v1182 = vsel %vm1130, %v1180, 0.0
    %v1183 = vrot.slane %v1182, 4
    %v1184 = vadd.f32 %v1182, %v1183
    %v1185 = vrot.slane %v1184, 2
    %v1186 = vadd.f32 %v1184, %v1185
    %v1187 = vrot.slane %v1186, 1
    %v1188 = vadd.f32 %v1186, %v1187
    %v1189 = vmul.f32 %v1188, %v1138
    %v1190 = vrot.slane %v1127, 4
    %v1192 = vsel %vm1130, %v1190, 0.0
    %v1193 = vrot.slane %v1192, 4
    %v1194 = vadd.f32 %v1192, %v1193
    %v1195 = vrot.slane %v1194, 2
    %v1196 = vadd.f32 %v1194, %v1195
    %v1197 = vrot.slane %v1196, 1
    %v1198 = vadd.f32 %v1196, %v1197
    %v1199 = vmul.f32 %v1198, %v1138
    %v1200 = vrot.slane %v1127, 6
    %v1202 = vsel %vm1130, %v1200, 0.0
    %v1203 = vrot.slane %v1202, 4
    %v1204 = vadd.f32 %v1202, %v1203
    %v1205 = vrot.slane %v1204, 2
    %v1206 = vadd.f32 %v1204, %v1205
    %v1207 = vrot.slane %v1206, 1
    %v1208 = vadd.f32 %v1206, %v1207
    %v1209 = vmul.f32 %v1208, %v1138
    %vm1210 = vcmask 1040384
    %v1211 = vsel %vm1210, %v1139, %v1150
    %v1212 = vsel %vm1025, %v1211, %v1160
    %vm1213 = vcmask 1042432
    %v1214 = vsel %vm1213, %v1212, %v1170
    %v1215 = vsel %vm1027, %v1214, %v1178
    %vm1216 = vcmask 1044480
    %v1217 = vsel %vm1216, %v1215, %v1189
    %v1218 = vsel %vm1029, %v1217, %v1199
    %vm1219 = vcmask 1046528
    %v1220 = vsel %vm1219, %v1218, %v1209
    %1222 = vrot.lane.b32.xlu0 %v1220, 127
    %v1223 = vpop.permute.xlu0 %1222
    %v1225 = vsub.f32 %v1220, %v1223
    %vm1226 = vcmp.ge.f32.partialorder %v1225, 0.0
    %v1227 = vand.u32 2147483647, %v1225
    %v1228 = vsub.f32 0.0, %v1227
    %v1229 = vmul.f32 %v1228, 1.442695
    %v1230 = vpow.pop %v1229
    %v1231 = vadd.f32 %v1230, 1.0
    %v1232 = vlog2.pop %v1231
    %v1233 = vmul.f32 %v1232, 0.6931472
    %v1234 = vsub.f32 0.0, %v1233
    %v1235 = vlaneseq
    %v1236 = vshrl.u32 %v1235, 7
    %v1237 = vsel %vm1226, %v1236, 8
    %vm1238 = vcmask 15368
    %v1239 = vsel %vm1238, %v1237, 2147483647
    %v1240 = vrot.slane %v1239, 4
    %vm1241 = vcmp.lt.s32.totalorder %v1239, %v1240
    %v1242 = vsel %vm1241, %v1239, %v1240
    %v1243 = vrot.slane %v1242, 2
    %vm1244 = vcmp.lt.s32.totalorder %v1242, %v1243
    %v1245 = vsel %vm1244, %v1242, %v1243
    %v1246 = vrot.slane %v1245, 1
    %vm1247 = vcmp.lt.s32.totalorder %v1245, %v1246
    %v1248 = vsel %vm1247, %v1245, %v1246
    %vm1249 = vcmp.lt.s32.totalorder %v1248, 7
    %v1250 = vsel %vm1249, %v1248, 7
    %vm1251 = vcmp.le.s32.totalorder %v1236, %v1250
    %v1252 = vsel %vm1251, %v1234, 0.0
    %1254 = vrot.lane.b32.xlu0 %v1252, 127
    %v1255 = vpop.permute.xlu0 %1254
    %vm1257 = vcmask 7168
    %1258 = vst.msk [vmem:[%s7] sm:$0xff] %vm1257, %v1255
    %v1259 = vadd.s32 %v1236, 8
    %v1260 = vadd.s32 %v1250, 1
    %v1261 = vmul.u32 %v1260, 2
    %vm1262 = vcmp.lt.s32.totalorder %v1236, %v1261
    %vm1263 = vcmp.lt.s32.totalorder %v1259, %v1261
    %1264 = vrot.lane.b32.xlu0 %v1122, 1
    %v1265 = vpop.permute.xlu0 %1264
    %1266 = vrot.lane.b32.xlu0 %v1127, 1
    %v1267 = vpop.permute.xlu0 %1266
    %v1270 = vsel %vm1262, %v1265, 0.0
    %v1271 = vsel %vm1263, %v1267, 0.0
    %1274 = vrot.lane.b32.xlu0 %v1270, 127
    %v1275 = vpop.permute.xlu0 %1274
    %1276 = vrot.lane.b32.xlu0 %v1271, 127
    %v1277 = vpop.permute.xlu0 %1276
    %1280 = vst.msk [vmem:[%s8] sm:$0xff] %vm1257, %v1275
    %1281 = vst.msk [vmem:[%s8 + $0x8] sm:$0xff] %vm1257, %v1277
    %vm1282 = vcmp.eq.s32.totalorder %v1250, 0
    %v1283 = vsel %vm1282, 1, 0
    %1284 = vset.pattern.permute.xlu0 1
    %1285 = vperm.xlu0 %1284, %v1283
    %v1286 = vpop.permute.xlu0 %1285
    %vm1287 = vcmp.eq.s32.totalorder %v1286, 1
    %v1288 = vsel %vm1287, %v1122, 0.0
    %vm1289 = vcmp.eq.s32.totalorder %v1250, 1
    %v1290 = vsel %vm1289, 1, 0
    %1291 = vset.pattern.permute.xlu0 1
    %1292 = vperm.xlu0 %1291, %v1290
    %v1293 = vpop.permute.xlu0 %1292
    %vm1294 = vcmp.eq.s32.totalorder %v1293, 1
    %v1296 = vrot.slane %v1288, 6
    %v1298 = vsel %vm1294, %v1122, %v1296
    %vm1299 = vcmp.eq.s32.totalorder %v1250, 2
    %v1300 = vsel %vm1299, 1, 0
    %1301 = vset.pattern.permute.xlu0 1
    %1302 = vperm.xlu0 %1301, %v1300
    %v1303 = vpop.permute.xlu0 %1302
    %vm1304 = vcmp.eq.s32.totalorder %v1303, 1
    %v1306 = vrot.slane %v1298, 6
    %v1308 = vsel %vm1304, %v1122, %v1306
    %vm1309 = vcmp.eq.s32.totalorder %v1250, 3
    %v1310 = vsel %vm1309, 1, 0
    %1311 = vset.pattern.permute.xlu0 1
    %1312 = vperm.xlu0 %1311, %v1310
    %v1313 = vpop.permute.xlu0 %1312
    %vm1314 = vcmp.eq.s32.totalorder %v1313, 1
    %v1316 = vrot.slane %v1308, 6
    %v1318 = vsel %vm1314, %v1122, %v1316
    %vm1319 = vcmp.eq.s32.totalorder %v1250, 4
    %v1320 = vsel %vm1319, 1, 0
    %1321 = vset.pattern.permute.xlu0 1
    %1322 = vperm.xlu0 %1321, %v1320
    %v1323 = vpop.permute.xlu0 %1322
    %vm1324 = vcmp.eq.s32.totalorder %v1323, 1
    %v1326 = vrot.slane %v1318, 6
    %v1328 = vsel %vm1324, %v1127, %v1326
    %vm1329 = vcmp.eq.s32.totalorder %v1250, 5
    %v1330 = vsel %vm1329, 1, 0
    %1331 = vset.pattern.permute.xlu0 1
    %1332 = vperm.xlu0 %1331, %v1330
    %v1333 = vpop.permute.xlu0 %1332
    %vm1334 = vcmp.eq.s32.totalorder %v1333, 1
    %v1336 = vrot.slane %v1328, 6
    %v1338 = vsel %vm1334, %v1127, %v1336
    %vm1339 = vcmp.eq.s32.totalorder %v1250, 6
    %v1340 = vsel %vm1339, 1, 0
    %1341 = vset.pattern.permute.xlu0 1
    %1342 = vperm.xlu0 %1341, %v1340
    %v1343 = vpop.permute.xlu0 %1342
    %vm1344 = vcmp.eq.s32.totalorder %v1343, 1
    %v1346 = vrot.slane %v1338, 6
    %v1348 = vsel %vm1344, %v1127, %v1346
    %vm1349 = vcmp.eq.s32.totalorder %v1250, 7
    %v1350 = vsel %vm1349, 1, 0
    %1351 = vset.pattern.permute.xlu0 1
    %1352 = vperm.xlu0 %1351, %v1350
    %v1353 = vpop.permute.xlu0 %1352
    %vm1354 = vcmp.eq.s32.totalorder %v1353, 1
    %v1356 = vrot.slane %v1348, 6
    %v1358 = vsel %vm1354, %v1127, %v1356
    %vm1359 = vcmask 56350
    %v1360 = vsel %vm1359, %v1358, -inf
    %v1361 = vrot.slane %v1360, 4
    %v1362 = vmax.f32 %v1360, %v1361
    %v1363 = vrot.slane %v1362, 2
    %v1364 = vmax.f32 %v1362, %v1363
    %v1365 = vrot.slane %v1364, 1
    %v1366 = vmax.f32 %v1364, %v1365
    %v1367 = vsub.f32 %v1358, %v1366
    %v1368 = vmul.f32 %v1367, 1.442695
    %v1369 = vpow.pop %v1368
    %v1371 = vrot.slane %v1369, 6
    %vm1373 = vcmask 50200
    %v1374 = vsel %vm1373, %v1371, 0.0
    %v1375 = vrot.slane %v1374, 4
    %v1376 = vadd.f32 %v1374, %v1375
    %v1377 = vrot.slane %v1376, 2
    %v1378 = vadd.f32 %v1376, %v1377
    %v1379 = vrot.slane %v1378, 1
    %v1380 = vadd.f32 %v1378, %v1379
    %v1381 = vrcp.pop %v1380
    %v1382 = vmul.f32 %v1369, %v1381
    %1384 = vrot.lane.b32.xlu0 %v1382, 125
    %v1385 = vpop.permute.xlu0 %1384
    %vm1387 = vcmask 31750
    %1388 = vst.msk [vmem:[#allocation5 - $0x6] sm:$0xc0] %vm1387, %v1385
    %1389 = vrot.lane.b32.xlu0 %v1250, 127
    %v1390 = vpop.permute.xlu0 %1389
    %vm1391 = vcmask 0
    %1392 = vst.msk [vmem:[#allocation6] sm:$0x1] %vm1391, %v1390
    // Predicated region
    $region30: #{tpu_custom_call.1} parent=1 // pred_check
      _
    $region31: #{tpu_custom_call.1} parent=1 // pred_check_branch
      %1394 = sbr.rel (0) target = $region33
    $region32: #{tpu_custom_call.1} parent=1 // pred_region
      %s1396 = ssub.s32 32, 32
      %1397 = vsyncadd [#allocation4], %s1396
      %s1399 = sshll.u32 [#allocation5], 4
      %s1400 = int_to_ptr.vmem [resolvable:$true] %s1399
      %1402 = dma.vmem_to_hbm [thread:$0]  %s1400, 32, %s6, [#allocation4]
    $region33: #{tpu_custom_call.1} parent=1 // pred_fallthru
      _
    // Predicated region
    $region34: #{tpu_custom_call.1} parent=1 // pred_check
      _
    $region35: #{tpu_custom_call.1} parent=1 // pred_check_branch
      %1404 = sbr.rel (0) target = $region37
    $region36: #{tpu_custom_call.1} parent=1 // pred_region
      _
    $region37: #{tpu_custom_call.1} parent=1 // pred_fallthru
      _
    // Predicated region
    $region38: #{tpu_custom_call.1} parent=1 // pred_check
      _
    $region39: #{tpu_custom_call.1} parent=1 // pred_check_branch
      %1406 = sbr.rel (0) target = $region41
    $region40: #{tpu_custom_call.1} parent=1 // pred_region
      _
    $region41: #{tpu_custom_call.1} parent=1 // pred_fallthru
      _
    // Predicated region
    $region42: #{tpu_custom_call.1} parent=1 // pred_check
      _
    $region43: #{tpu_custom_call.1} parent=1 // pred_check_branch
      %1408 = sbr.rel (0) target = $region45
    $region44: #{tpu_custom_call.1} parent=1 // pred_region
      %s1410 = ssub.s32 16, 16
      %1411 = vsyncadd [#allocation7], %s1410
      %s1413 = sshll.u32 [#allocation6], 4
      %s1414 = int_to_ptr.vmem [resolvable:$true] %s1413
      %1416 = dma.vmem_to_hbm [thread:$0]  %s1414, 16, %s9, [#allocation7]
    $region45: #{tpu_custom_call.1} parent=1 // pred_fallthru
      _
    // Predicated region
    $region46: #{tpu_custom_call.1} parent=1 // pred_check
      _
    $region47: #{tpu_custom_call.1} parent=1 // pred_check_branch
      %1418 = sbr.rel (0) target = $region49
    $region48: #{tpu_custom_call.1} parent=1 // pred_region
      %1419 = dma.done [#allocation4], 32
    $region49: #{tpu_custom_call.1} parent=1 // pred_fallthru
      _
    // Predicated region
    $region50: #{tpu_custom_call.1} parent=1 // pred_check
      _
    $region51: #{tpu_custom_call.1} parent=1 // pred_check_branch
      %1421 = sbr.rel (0) target = $region53
    $region52: #{tpu_custom_call.1} parent=1 // pred_region
      _
    $region53: #{tpu_custom_call.1} parent=1 // pred_fallthru
      _
    // Predicated region
    $region54: #{tpu_custom_call.1} parent=1 // pred_check
      _
    $region55: #{tpu_custom_call.1} parent=1 // pred_check_branch
      %1423 = sbr.rel (0) target = $region57
    $region56: #{tpu_custom_call.1} parent=1 // pred_region
      _
    $region57: #{tpu_custom_call.1} parent=1 // pred_fallthru
      _
    // Predicated region
    $region58: #{tpu_custom_call.1} parent=1 // pred_check
      _
    $region59: #{tpu_custom_call.1} parent=1 // pred_check_branch
      %1425 = sbr.rel (0) target = $region61
    $region60: #{tpu_custom_call.1} parent=1 // pred_region
      %1426 = dma.done [#allocation7], 16
    $region61: #{tpu_custom_call.1} parent=1 // pred_fallthru
      _
    %1427 = vsyncpa [#allocation3], 1
    %1428 = vsyncpa [#allocation4], 1
    %1429 = vsyncpa [#allocation7], 1

</llo_original>
